<compile_context>
chip_gen: v6e
topology: v6e:2x2x1
jax: 0.10.0
libtpu: 0.0.40
codegen_flags: <defaults>
</compile_context>

<pallas_src>
import jax
import jax.numpy as jnp
from jax import lax
from jax.experimental import pallas as pl
from jax.experimental.pallas import tpu as pltpu

HIDDEN = 768
NUM_EMERGENCY_LEVELS = 5
NUM_DISASTER_TYPES = 1
NUM_SENTIMENTS = 4
NUM_OUT = NUM_EMERGENCY_LEVELS + NUM_DISASTER_TYPES + NUM_SENTIMENTS  # 10
OUT_PAD = 128    # lane-dense padded logits width
B_TILE = 128     # batch tile (fills MXU rows; sweep 256 on v6e/v7x)
VOCAB_PAD = 128  # lane-dense padded vocab axis


def _classifier_kernel(ids_ref, mask_ref, emb_enc_ref, b_enc_ref,
                       w_head_ref, b_head_ref, logits_ref):
    """Fused embedding-pool (as matmul) + tanh encoder + 3-head classifier.

    ids_ref:     [BT, S]    int32 token ids
    mask_ref:    [BT, S]    float32 attention mask (1.0 = keep)
    emb_enc_ref: [V, H]     bf16, precomputed emb_table @ w_enc (VMEM resident)
    b_enc_ref:   [1, H]     f32
    w_head_ref:  [H, 128]   bf16 concat(emergency 5, disaster 1, sentiment 4) + pad
    b_head_ref:  [1, 128]   f32
    logits_ref:  [BT, 128]  f32 lane-dense logits (first 10 cols valid)
    """
    ids = ids_ref[...]                                   # [BT, S] int32
    mask = mask_ref[...]                                 # [BT, S] f32
    bt, s = ids.shape
    v = emb_enc_ref.shape[0]                             # lane-padded vocab

    # masked mean-pool normalization (exact f32 divide for parity with reference)
    denom = jnp.maximum(jnp.sum(mask, axis=1, keepdims=True), 1.0)   # [BT, 1]
    tok_w = mask / denom                                             # [BT, S]

    # Scatter per-token pooling weights onto the vocab axis WITHOUT a [BT,S,V]
    # intermediate: short static loop over S, live set stays at one [BT,V] f32
    # buffer.  Position 0 gets an extra +1.0 (CLS token of the synthetic backbone).
    iota_v = lax.broadcasted_iota(jnp.int32, (bt, v), 1)             # [BT, V]
    weights_bv = jnp.where(ids[:, 0:1] == iota_v, tok_w[:, 0:1] + 1.0, 0.0)
    for si in range(1, s):
        weights_bv = weights_bv + jnp.where(
            ids[:, si:si + 1] == iota_v, tok_w[:, si:si + 1], 0.0)   # [BT, V]

    # One MXU matmul = gather + mean-pool + CLS + (folded) encoder projection.
    # emb_enc = emb_table @ w_enc was precomputed at init (f32, cast to bf16).
    h = jnp.tanh(
        jnp.dot(weights_bv.astype(jnp.bfloat16), emb_enc_ref[...],
                preferred_element_type=jnp.float32)
        + b_enc_ref[...]
    )                                                                # [BT, H]

    # nn.Dropout(0.3) -> identity at inference time.
    # Fused classification heads, lane-dense 128-wide output store.
    logits_ref[...] = (
        jnp.dot(h.astype(jnp.bfloat16), w_head_ref[...],
                preferred_element_type=jnp.float32)
        + b_head_ref[...]
    )                                                                # [BT, 128]


def _run_kernel(ids, mask, emb_enc, b_enc, w_head, b_head):
    b, s = ids.shape
    b_pad = ((b + B_TILE - 1) // B_TILE) * B_TILE
    if b_pad != b:
        pad = b_pad - b
        ids = jnp.pad(ids, ((0, pad), (0, 0)))     # padded rows: id 0, mask 0
        mask = jnp.pad(mask, ((0, pad), (0, 0)))

    const = lambda i: (0, 0)   # weights: same block every batch tile (VMEM resident)

    out = pl.pallas_call(
        _classifier_kernel,
        out_shape=jax.ShapeDtypeStruct((b_pad, OUT_PAD), jnp.float32),
        grid_spec=pltpu.PrefetchScalarGridSpec(
            num_scalar_prefetch=0,
            grid=(b_pad // B_TILE,),
            in_specs=[
                pl.BlockSpec((B_TILE, s), lambda i: (i, 0)),          # ids
                pl.BlockSpec((B_TILE, s), lambda i: (i, 0)),          # mask
                pl.BlockSpec(emb_enc.shape, const),                   # folded emb@enc
                pl.BlockSpec(b_enc.shape, const),                     # b_enc
                pl.BlockSpec(w_head.shape, const),                    # w_head (padded)
                pl.BlockSpec(b_head.shape, const),                    # b_head (padded)
            ],
            out_specs=pl.BlockSpec((B_TILE, OUT_PAD), lambda i: (i, 0)),
        ),
        compiler_params=pltpu.CompilerParams(
            dimension_semantics=("parallel",),          # megacore split on v7x
            vmem_limit_bytes=16 * 1024 * 1024,          # resident set << 2 MiB
        ),
    )(ids, mask, emb_enc, b_enc, w_head, b_head)

    return out[:b, :NUM_OUT]


def _cross_entropy(logits, labels):
    # PyTorch nn.CrossEntropyLoss (mean reduction) semantics
    logp = jax.nn.log_softmax(logits, axis=-1)
    picked = jnp.take_along_axis(logp, labels[:, None], axis=1)[:, 0]
    return -jnp.mean(picked)


def init_params(key, vocab_size=64):
    k0, k1, k2, k3 = jax.random.split(key, 4)
    v_pad = max(VOCAB_PAD, ((vocab_size + VOCAB_PAD - 1) // VOCAB_PAD) * VOCAB_PAD)

    # synthetic backbone weights (f32 init)
    emb = jnp.zeros((v_pad, HIDDEN), jnp.float32)
    emb = emb.at[:vocab_size].set(
        0.02 * jax.random.normal(k0, (vocab_size, HIDDEN), jnp.float32))
    w_enc = 0.02 * jax.random.normal(k1, (HIDDEN, HIDDEN), jnp.float32)
    # fold the encoder projection into the embedding table (exact in f32, then bf16)
    emb_enc = (emb @ w_enc).astype(jnp.bfloat16)          # [v_pad, H]

    # concat of emergency_level_head (5), disaster_type_head (1),
    # sentiment_head (4), zero-padded to 128 lanes
    w_head = jnp.zeros((HIDDEN, OUT_PAD), jnp.float32)
    w_head = w_head.at[:, :NUM_OUT].set(
        0.02 * jax.random.normal(k2, (HIDDEN, NUM_OUT), jnp.float32))
    b_head = jnp.zeros((1, OUT_PAD), jnp.float32)
    b_head = b_head.at[:, :NUM_OUT].set(
        0.01 * jax.random.normal(k3, (1, NUM_OUT), jnp.float32))

    return {
        "emb_enc": emb_enc,
        "b_enc": jnp.zeros((1, HIDDEN), jnp.float32),
        "w_head": w_head.astype(jnp.bfloat16),
        "b_head": b_head,
    }


def emergency_classifier_forward(params, input_ids, attention_mask=None,
                                 emergency_level_labels=None,
                                 disaster_type_labels=None,
                                 sentiment_labels=None):
    B, S = input_ids.shape
    if attention_mask is None:
        attention_mask = jnp.ones((B, S), jnp.float32)
    mask = attention_mask.astype(jnp.float32)

    logits = _run_kernel(input_ids.astype(jnp.int32), mask,
                         params["emb_enc"], params["b_enc"],
                         params["w_head"], params["b_head"])

    emergency_level_logits = logits[:, :NUM_EMERGENCY_LEVELS]
    disaster_type_logits = logits[:, NUM_EMERGENCY_LEVELS:
                                  NUM_EMERGENCY_LEVELS + NUM_DISASTER_TYPES]
    sentiment_logits = logits[:, NUM_EMERGENCY_LEVELS + NUM_DISASTER_TYPES:]

    output = {
        "emergency_level_logits": emergency_level_logits,
        "disaster_type_logits": disaster_type_logits,
        "sentiment_logits": sentiment_logits,
    }

    if emergency_level_labels is not None and sentiment_labels is not None:
        losses = {
            "emergency_level_loss": _cross_entropy(emergency_level_logits,
                                                   emergency_level_labels),
            "sentiment_loss": _cross_entropy(sentiment_logits, sentiment_labels),
        }
        # guard against disaster_type_labels=None (the PyTorch original would crash)
        if disaster_type_labels is not None:
            losses["disaster_type_loss"] = _cross_entropy(disaster_type_logits,
                                                          disaster_type_labels)
        output["losses"] = losses
    return output


def predict(params, input_ids, attention_mask):
    out = emergency_classifier_forward(params, input_ids, attention_mask)
    return {
        "emergency_level": jnp.argmax(out["emergency_level_logits"], axis=1),
        "disaster_type": jnp.argmax(out["disaster_type_logits"], axis=1),
        "sentiment": jnp.argmax(out["sentiment_logits"], axis=1),
    }


if __name__ == "__main__":
    key = jax.random.PRNGKey(0)
    k_param, k_ids, k_el, k_dt, k_s = jax.random.split(key, 5)

    B, S, VOCAB = 2, 8, 64
    params = init_params(k_param, vocab_size=VOCAB)

    input_ids = jax.random.randint(k_ids, (B, S), 0, VOCAB, dtype=jnp.int32)
    attention_mask = jnp.ones((B, S), jnp.float32).at[1, 6:].set(0.0)

    emergency_level_labels = jax.random.randint(k_el, (B,), 0, NUM_EMERGENCY_LEVELS,
                                                dtype=jnp.int32)
    disaster_type_labels = jax.random.randint(k_dt, (B,), 0, NUM_DISASTER_TYPES,
                                              dtype=jnp.int32)
    sentiment_labels = jax.random.randint(k_s, (B,), 0, NUM_SENTIMENTS,
                                          dtype=jnp.int32)

    out = emergency_classifier_forward(
        params, input_ids, attention_mask,
        emergency_level_labels=emergency_level_labels,
        disaster_type_labels=disaster_type_labels,
        sentiment_labels=sentiment_labels,
    )
    jax.block_until_ready(out)

    assert out["emergency_level_logits"].shape == (B, NUM_EMERGENCY_LEVELS)
    assert out["disaster_type_logits"].shape == (B, NUM_DISASTER_TYPES)
    assert out["sentiment_logits"].shape == (B, NUM_SENTIMENTS)
    assert "losses" in out
    assert all(jnp.isfinite(v) for v in out["losses"].values())

    preds = predict(params, input_ids, attention_mask)
    jax.block_until_ready(preds)
    assert preds["emergency_level"].shape == (B,)

    print("KERNEL_OK")
</pallas_src>

<mosaic_0001>
module attributes {stable_mosaic.version = 11 : i64} {
  func.func @_classifier_kernel(%arg0: i32, %arg1: memref<128x8xi32, #tpu.memory_space<vmem>>, %arg2: memref<128x8xf32, #tpu.memory_space<vmem>>, %arg3: memref<128x768xbf16, #tpu.memory_space<vmem>>, %arg4: memref<1x768xf32, #tpu.memory_space<vmem>>, %arg5: memref<768x128xbf16, #tpu.memory_space<vmem>>, %arg6: memref<1x128xf32, #tpu.memory_space<vmem>>, %arg7: memref<128x128xf32, #tpu.memory_space<vmem>>) attributes {dimension_semantics = [#tpu.dimension_semantics<parallel>], iteration_bounds = array<i64: 1>, scalar_prefetch = 0 : i64, scratch_operands = 0 : i64, tpu.core_type = #tpu.core_type<tc>, window_params = [{transform_indices = @transform_0, window_bounds = array<i64: 128, 8>}, {transform_indices = @transform_1, window_bounds = array<i64: 128, 8>}, {pipeline_mode = #tpu.pipeline_mode<synchronous>, transform_indices = @transform_2, window_bounds = array<i64: 128, 768>}, {pipeline_mode = #tpu.pipeline_mode<synchronous>, transform_indices = @transform_3, window_bounds = array<i64: 1, 768>}, {pipeline_mode = #tpu.pipeline_mode<synchronous>, transform_indices = @transform_4, window_bounds = array<i64: 768, 128>}, {pipeline_mode = #tpu.pipeline_mode<synchronous>, transform_indices = @transform_5, window_bounds = array<i64: 1, 128>}, {transform_indices = @transform_6, window_bounds = array<i64: 128, 128>}]} {
    %c0 = arith.constant 0 : index
    %c0_0 = arith.constant 0 : index
    %0 = vector.load %arg1[%c0, %c0_0] : memref<128x8xi32, #tpu.memory_space<vmem>>, vector<128x8xi32>
    %c0_1 = arith.constant 0 : index
    %c0_2 = arith.constant 0 : index
    %1 = vector.load %arg2[%c0_1, %c0_2] : memref<128x8xf32, #tpu.memory_space<vmem>>, vector<128x8xf32>
    %cst = arith.constant dense<0.000000e+00> : vector<128xf32>
    %2 = vector.multi_reduction <add>, %1, %cst [1] : vector<128x8xf32> to vector<128xf32>
    %3 = vector.shape_cast %2 : vector<128xf32> to vector<128x1xf32>
    %cst_3 = arith.constant 1.000000e+00 : f32
    %4 = vector.broadcast %cst_3 : f32 to vector<128x1xf32>
    %5 = arith.maximumf %3, %4 : vector<128x1xf32>
    %6 = vector.broadcast %5 : vector<128x1xf32> to vector<128x8xf32>
    %7 = arith.divf %1, %6 : vector<128x8xf32>
    %8 = tpu.iota {dimensions = array<i32: 1>} : vector<128x128xi32>
    %9 = vector.extract_strided_slice %0 {offsets = [0, 0], sizes = [128, 1], strides = [1, 1]} : vector<128x8xi32> to vector<128x1xi32>
    %10 = vector.broadcast %9 : vector<128x1xi32> to vector<128x128xi32>
    %11 = arith.cmpi eq, %10, %8 : vector<128x128xi32>
    %12 = vector.extract_strided_slice %7 {offsets = [0, 0], sizes = [128, 1], strides = [1, 1]} : vector<128x8xf32> to vector<128x1xf32>
    %cst_4 = arith.constant 1.000000e+00 : f32
    %13 = vector.broadcast %cst_4 : f32 to vector<128x1xf32>
    %14 = arith.addf %12, %13 : vector<128x1xf32>
    %cst_5 = arith.constant 0.000000e+00 : f32
    %15 = vector.shape_cast %14 : vector<128x1xf32> to vector<128x1xf32>
    %16 = vector.broadcast %15 : vector<128x1xf32> to vector<128x128xf32>
    %17 = vector.broadcast %cst_5 : f32 to vector<128x128xf32>
    %18 = arith.select %11, %16, %17 : vector<128x128xi1>, vector<128x128xf32>
    %19 = vector.extract_strided_slice %0 {offsets = [0, 1], sizes = [128, 1], strides = [1, 1]} : vector<128x8xi32> to vector<128x1xi32>
    %20 = vector.broadcast %19 : vector<128x1xi32> to vector<128x128xi32>
    %21 = arith.cmpi eq, %20, %8 : vector<128x128xi32>
    %22 = vector.extract_strided_slice %7 {offsets = [0, 1], sizes = [128, 1], strides = [1, 1]} : vector<128x8xf32> to vector<128x1xf32>
    %cst_6 = arith.constant 0.000000e+00 : f32
    %23 = vector.shape_cast %22 : vector<128x1xf32> to vector<128x1xf32>
    %24 = vector.broadcast %23 : vector<128x1xf32> to vector<128x128xf32>
    %25 = vector.broadcast %cst_6 : f32 to vector<128x128xf32>
    %26 = arith.select %21, %24, %25 : vector<128x128xi1>, vector<128x128xf32>
    %27 = arith.addf %18, %26 : vector<128x128xf32>
    %28 = vector.extract_strided_slice %0 {offsets = [0, 2], sizes = [128, 1], strides = [1, 1]} : vector<128x8xi32> to vector<128x1xi32>
    %29 = vector.broadcast %28 : vector<128x1xi32> to vector<128x128xi32>
    %30 = arith.cmpi eq, %29, %8 : vector<128x128xi32>
    %31 = vector.extract_strided_slice %7 {offsets = [0, 2], sizes = [128, 1], strides = [1, 1]} : vector<128x8xf32> to vector<128x1xf32>
    %cst_7 = arith.constant 0.000000e+00 : f32
    %32 = vector.shape_cast %31 : vector<128x1xf32> to vector<128x1xf32>
    %33 = vector.broadcast %32 : vector<128x1xf32> to vector<128x128xf32>
    %34 = vector.broadcast %cst_7 : f32 to vector<128x128xf32>
    %35 = arith.select %30, %33, %34 : vector<128x128xi1>, vector<128x128xf32>
    %36 = arith.addf %27, %35 : vector<128x128xf32>
    %37 = vector.extract_strided_slice %0 {offsets = [0, 3], sizes = [128, 1], strides = [1, 1]} : vector<128x8xi32> to vector<128x1xi32>
    %38 = vector.broadcast %37 : vector<128x1xi32> to vector<128x128xi32>
    %39 = arith.cmpi eq, %38, %8 : vector<128x128xi32>
    %40 = vector.extract_strided_slice %7 {offsets = [0, 3], sizes = [128, 1], strides = [1, 1]} : vector<128x8xf32> to vector<128x1xf32>
    %cst_8 = arith.constant 0.000000e+00 : f32
    %41 = vector.shape_cast %40 : vector<128x1xf32> to vector<128x1xf32>
    %42 = vector.broadcast %41 : vector<128x1xf32> to vector<128x128xf32>
    %43 = vector.broadcast %cst_8 : f32 to vector<128x128xf32>
    %44 = arith.select %39, %42, %43 : vector<128x128xi1>, vector<128x128xf32>
    %45 = arith.addf %36, %44 : vector<128x128xf32>
    %46 = vector.extract_strided_slice %0 {offsets = [0, 4], sizes = [128, 1], strides = [1, 1]} : vector<128x8xi32> to vector<128x1xi32>
    %47 = vector.broadcast %46 : vector<128x1xi32> to vector<128x128xi32>
    %48 = arith.cmpi eq, %47, %8 : vector<128x128xi32>
    %49 = vector.extract_strided_slice %7 {offsets = [0, 4], sizes = [128, 1], strides = [1, 1]} : vector<128x8xf32> to vector<128x1xf32>
    %cst_9 = arith.constant 0.000000e+00 : f32
    %50 = vector.shape_cast %49 : vector<128x1xf32> to vector<128x1xf32>
    %51 = vector.broadcast %50 : vector<128x1xf32> to vector<128x128xf32>
    %52 = vector.broadcast %cst_9 : f32 to vector<128x128xf32>
    %53 = arith.select %48, %51, %52 : vector<128x128xi1>, vector<128x128xf32>
    %54 = arith.addf %45, %53 : vector<128x128xf32>
    %55 = vector.extract_strided_slice %0 {offsets = [0, 5], sizes = [128, 1], strides = [1, 1]} : vector<128x8xi32> to vector<128x1xi32>
    %56 = vector.broadcast %55 : vector<128x1xi32> to vector<128x128xi32>
    %57 = arith.cmpi eq, %56, %8 : vector<128x128xi32>
    %58 = vector.extract_strided_slice %7 {offsets = [0, 5], sizes = [128, 1], strides = [1, 1]} : vector<128x8xf32> to vector<128x1xf32>
    %cst_10 = arith.constant 0.000000e+00 : f32
    %59 = vector.shape_cast %58 : vector<128x1xf32> to vector<128x1xf32>
    %60 = vector.broadcast %59 : vector<128x1xf32> to vector<128x128xf32>
    %61 = vector.broadcast %cst_10 : f32 to vector<128x128xf32>
    %62 = arith.select %57, %60, %61 : vector<128x128xi1>, vector<128x128xf32>
    %63 = arith.addf %54, %62 : vector<128x128xf32>
    %64 = vector.extract_strided_slice %0 {offsets = [0, 6], sizes = [128, 1], strides = [1, 1]} : vector<128x8xi32> to vector<128x1xi32>
    %65 = vector.broadcast %64 : vector<128x1xi32> to vector<128x128xi32>
    %66 = arith.cmpi eq, %65, %8 : vector<128x128xi32>
    %67 = vector.extract_strided_slice %7 {offsets = [0, 6], sizes = [128, 1], strides = [1, 1]} : vector<128x8xf32> to vector<128x1xf32>
    %cst_11 = arith.constant 0.000000e+00 : f32
    %68 = vector.shape_cast %67 : vector<128x1xf32> to vector<128x1xf32>
    %69 = vector.broadcast %68 : vector<128x1xf32> to vector<128x128xf32>
    %70 = vector.broadcast %cst_11 : f32 to vector<128x128xf32>
    %71 = arith.select %66, %69, %70 : vector<128x128xi1>, vector<128x128xf32>
    %72 = arith.addf %63, %71 : vector<128x128xf32>
    %73 = vector.extract_strided_slice %0 {offsets = [0, 7], sizes = [128, 1], strides = [1, 1]} : vector<128x8xi32> to vector<128x1xi32>
    %74 = vector.broadcast %73 : vector<128x1xi32> to vector<128x128xi32>
    %75 = arith.cmpi eq, %74, %8 : vector<128x128xi32>
    %76 = vector.extract_strided_slice %7 {offsets = [0, 7], sizes = [128, 1], strides = [1, 1]} : vector<128x8xf32> to vector<128x1xf32>
    %cst_12 = arith.constant 0.000000e+00 : f32
    %77 = vector.shape_cast %76 : vector<128x1xf32> to vector<128x1xf32>
    %78 = vector.broadcast %77 : vector<128x1xf32> to vector<128x128xf32>
    %79 = vector.broadcast %cst_12 : f32 to vector<128x128xf32>
    %80 = arith.select %75, %78, %79 : vector<128x128xi1>, vector<128x128xf32>
    %81 = arith.addf %72, %80 : vector<128x128xf32>
    %82 = arith.truncf %81 : vector<128x128xf32> to vector<128x128xbf16>
    %c0_13 = arith.constant 0 : index
    %c0_14 = arith.constant 0 : index
    %83 = vector.load %arg3[%c0_13, %c0_14] : memref<128x768xbf16, #tpu.memory_space<vmem>>, vector<128x768xbf16>
    %cst_15 = arith.constant dense<0.000000e+00> : vector<128x768xf32>
    %84 = tpu.matmul %82, %83, %cst_15 {dimension_numbers = #tpu.dot_dimension_numbers<[1], [0], [0], [1], [0, 0, 1, 1], [], []>} : vector<128x128xbf16>, vector<128x768xbf16>, vector<128x768xf32> -> vector<128x768xf32>
    %c0_16 = arith.constant 0 : index
    %c0_17 = arith.constant 0 : index
    %85 = vector.load %arg4[%c0_16, %c0_17] : memref<1x768xf32, #tpu.memory_space<vmem>>, vector<1x768xf32>
    %86 = vector.broadcast %85 : vector<1x768xf32> to vector<128x768xf32>
    %87 = arith.addf %84, %86 : vector<128x768xf32>
    %88 = math.tanh %87 : vector<128x768xf32>
    %89 = arith.truncf %88 : vector<128x768xf32> to vector<128x768xbf16>
    %c0_18 = arith.constant 0 : index
    %c0_19 = arith.constant 0 : index
    %90 = vector.load %arg5[%c0_18, %c0_19] : memref<768x128xbf16, #tpu.memory_space<vmem>>, vector<768x128xbf16>
    %cst_20 = arith.constant dense<0.000000e+00> : vector<128x128xf32>
    %91 = tpu.matmul %89, %90, %cst_20 {dimension_numbers = #tpu.dot_dimension_numbers<[1], [0], [0], [1], [0, 0, 1, 1], [], []>} : vector<128x768xbf16>, vector<768x128xbf16>, vector<128x128xf32> -> vector<128x128xf32>
    %c0_21 = arith.constant 0 : index
    %c0_22 = arith.constant 0 : index
    %92 = vector.load %arg6[%c0_21, %c0_22] : memref<1x128xf32, #tpu.memory_space<vmem>>, vector<1x128xf32>
    %93 = vector.broadcast %92 : vector<1x128xf32> to vector<128x128xf32>
    %94 = arith.addf %91, %93 : vector<128x128xf32>
    %c0_23 = arith.constant 0 : index
    %c0_24 = arith.constant 0 : index
    %95 = vector.load %arg7[%c0_23, %c0_24] : memref<128x128xf32, #tpu.memory_space<vmem>>, vector<128x128xf32>
    tpu.vector_store %arg7[%c0_23, %c0_24], %94 {strides = array<i32>} : memref<128x128xf32, #tpu.memory_space<vmem>>, vector<128x128xf32>,
    return
  }
  func.func @transform_0(%arg0: i32) -> (i32, i32) {
    %c0_i32 = arith.constant 0 : i32
    %c0_i32_0 = arith.constant 0 : i32
    return %arg0, %c0_i32 : i32, i32
  }
  func.func @transform_1(%arg0: i32) -> (i32, i32) {
    %c0_i32 = arith.constant 0 : i32
    %c0_i32_0 = arith.constant 0 : i32
    return %arg0, %c0_i32 : i32, i32
  }
  func.func @transform_2(%arg0: i32) -> (i32, i32) {
    %c0_i32 = arith.constant 0 : i32
    %c0_i32_0 = arith.constant 0 : i32
    %c0_i32_1 = arith.constant 0 : i32
    return %c0_i32, %c0_i32_0 : i32, i32
  }
  func.func @transform_3(%arg0: i32) -> (i32, i32) {
    %c0_i32 = arith.constant 0 : i32
    %c0_i32_0 = arith.constant 0 : i32
    %c0_i32_1 = arith.constant 0 : i32
    return %c0_i32, %c0_i32_0 : i32, i32
  }
  func.func @transform_4(%arg0: i32) -> (i32, i32) {
    %c0_i32 = arith.constant 0 : i32
    %c0_i32_0 = arith.constant 0 : i32
    %c0_i32_1 = arith.constant 0 : i32
    return %c0_i32, %c0_i32_0 : i32, i32
  }
  func.func @transform_5(%arg0: i32) -> (i32, i32) {
    %c0_i32 = arith.constant 0 : i32
    %c0_i32_0 = arith.constant 0 : i32
    %c0_i32_1 = arith.constant 0 : i32
    return %c0_i32, %c0_i32_0 : i32, i32
  }
  func.func @transform_6(%arg0: i32) -> (i32, i32) {
    %c0_i32 = arith.constant 0 : i32
    %c0_i32_0 = arith.constant 0 : i32
    return %arg0, %c0_i32 : i32, i32
  }
}

</mosaic_0001>

<llo_original>
// kernel: tpu_custom_call.1
$region0: #{tpu_custom_call.1}
  #allocation0 [shape = 'u32[]', space=smem, size = 0x4, offset = 0x4, fixed_abs, tag = 'smem constant byte address 0x4 - core index']
  #allocation1 [shape = 'u32[144,128]{1,0:T(1,128)}', space=vmem, size = 0x12000, scoped, tag = 'internal scratch']
  %s0 = inlined_call_operand.vmem [shape: s32[128,8], index: 0, kind: input, shape index: {}]
  %s1 = inlined_call_operand.vmem [shape: f32[128,8], index: 1, kind: input, shape index: {}]
  %s2 = inlined_call_operand.hbm [shape: bf16[128,768], index: 2, kind: input, shape index: {}]
  %s3 = inlined_call_operand.vmem [shape: f32[1,768], index: 3, kind: input, shape index: {}]
  %s4 = inlined_call_operand.hbm [shape: bf16[768,128], index: 4, kind: input, shape index: {}]
  %s5 = inlined_call_operand.vmem [shape: f32[1,128], index: 5, kind: input, shape index: {}]
  %s6 = inlined_call_operand.hbm [shape: f32[128,128], index: 6, kind: output, shape index: {}]
  %s7 = sld [smem:[#allocation0]]
  $region42: #{tpu_custom_call.1} parent=0
    _
  %s9 = ssub.s32 1, %s7
  %s10 = scalar_select 0, %s9, %s7
  $region1: #{tpu_custom_call.1} parent=0
    #allocation2 [shape = 'u8[196608]{0}', space=vmem, size = 0x30000, scoped, tag = 'input window, operand 2, single buffered']
    #allocation3 [shape = 's32[1]{0}', space=sflag, size = 0x4, scoped, tag = 'scoped memory for tpu_custom_call.1']
    #allocation4 [shape = 's32[1]{0}', space=sflag, size = 0x4, scoped, tag = 'scoped memory for tpu_custom_call.1']
    #allocation5 [shape = 'u8[196608]{0}', space=vmem, size = 0x30000, scoped, tag = 'input window, operand 4, single buffered']
    #allocation6 [shape = 's32[1]{0}', space=sflag, size = 0x4, scoped, tag = 'scoped memory for tpu_custom_call.1']
    #allocation7 [shape = 'u8[65536]{0}', space=vmem, size = 0x10000, scoped, tag = 'output window, operand 0, single buffered']
    %11 = vsyncpa [#allocation3], 0
    %12 = vsyncpa [#allocation6], 0
    %13 = vsyncpa [#allocation4], 0
    // Predicated region
    $region2: #{tpu_custom_call.1} parent=1 // pred_check
      _
    $region3: #{tpu_custom_call.1} parent=1 // pred_check_branch
      %15 = sbr.rel (0) target = $region5
    $region4: #{tpu_custom_call.1} parent=1 // pred_region
      _
    $region5: #{tpu_custom_call.1} parent=1 // pred_fallthru
      _
    // Predicated region
    $region6: #{tpu_custom_call.1} parent=1 // pred_check
      _
    $region7: #{tpu_custom_call.1} parent=1 // pred_check_branch
      %17 = sbr.rel (0) target = $region9
    $region8: #{tpu_custom_call.1} parent=1 // pred_region
      _
    $region9: #{tpu_custom_call.1} parent=1 // pred_fallthru
      _
    // Predicated region
    $region10: #{tpu_custom_call.1} parent=1 // pred_check
      _
    $region11: #{tpu_custom_call.1} parent=1 // pred_check_branch
      %19 = sbr.rel (0) target = $region13
    $region12: #{tpu_custom_call.1} parent=1 // pred_region
      %s21 = ssub.s32 6144, 6144
      %22 = vsyncadd [#allocation3], %s21
      %s23 = sshll.u32 [#allocation2], 4
      %s24 = int_to_ptr.vmem [resolvable:$true] %s23
      %29 = dma.hbm_to_vmem [thread:$0]  %s2, 6144, %s24, [#allocation3], 384, 384, 24
    $region13: #{tpu_custom_call.1} parent=1 // pred_fallthru
      _
    // Predicated region
    $region14: #{tpu_custom_call.1} parent=1 // pred_check
      _
    $region15: #{tpu_custom_call.1} parent=1 // pred_check_branch
      %31 = sbr.rel (0) target = $region17
    $region16: #{tpu_custom_call.1} parent=1 // pred_region
      _
    $region17: #{tpu_custom_call.1} parent=1 // pred_fallthru
      _
    // Predicated region
    $region18: #{tpu_custom_call.1} parent=1 // pred_check
      _
    $region19: #{tpu_custom_call.1} parent=1 // pred_check_branch
      %33 = sbr.rel (0) target = $region21
    $region20: #{tpu_custom_call.1} parent=1 // pred_region
      %s35 = ssub.s32 6144, 6144
      %36 = vsyncadd [#allocation6], %s35
      %s37 = sshll.u32 [#allocation5], 4
      %s38 = int_to_ptr.vmem [resolvable:$true] %s37
      %43 = dma.hbm_to_vmem [thread:$0]  %s4, 6144, %s38, [#allocation6], 64, 64, 4
    $region21: #{tpu_custom_call.1} parent=1 // pred_fallthru
      _
    // Predicated region
    $region22: #{tpu_custom_call.1} parent=1 // pred_check
      _
    $region23: #{tpu_custom_call.1} parent=1 // pred_check_branch
      %45 = sbr.rel (0) target = $region25
    $region24: #{tpu_custom_call.1} parent=1 // pred_region
      _
    $region25: #{tpu_custom_call.1} parent=1 // pred_fallthru
      _
    // Predicated region
    $region26: #{tpu_custom_call.1} parent=1 // pred_check
      _
    $region27: #{tpu_custom_call.1} parent=1 // pred_check_branch
      %47 = sbr.rel (0) target = $region29
    $region28: #{tpu_custom_call.1} parent=1 // pred_region
      %48 = dma.done [#allocation3], 6144
    $region29: #{tpu_custom_call.1} parent=1 // pred_fallthru
      _
    // Predicated region
    $region30: #{tpu_custom_call.1} parent=1 // pred_check
      _
    $region31: #{tpu_custom_call.1} parent=1 // pred_check_branch
      %50 = sbr.rel (0) target = $region33
    $region32: #{tpu_custom_call.1} parent=1 // pred_region
      %51 = dma.done [#allocation6], 6144
    $region33: #{tpu_custom_call.1} parent=1 // pred_fallthru
      _
    %v53 = vld [vmem:[%s0] sm:$0xff]
    %v54 = vld [vmem:[%s0 + $0x8] sm:$0xff]
    %v55 = vld [vmem:[%s0 + $0x10] sm:$0xff]
    %v56 = vld [vmem:[%s0 + $0x18] sm:$0xff]
    %v57 = vld [vmem:[%s0 + $0x20] sm:$0xff]
    %v58 = vld [vmem:[%s0 + $0x28] sm:$0xff]
    %v59 = vld [vmem:[%s0 + $0x30] sm:$0xff]
    %v60 = vld [vmem:[%s0 + $0x38] sm:$0xff]
    %v61 = vld [vmem:[%s0 + $0x40] sm:$0xff]
    %v62 = vld [vmem:[%s0 + $0x48] sm:$0xff]
    %v63 = vld [vmem:[%s0 + $0x50] sm:$0xff]
    %v64 = vld [vmem:[%s0 + $0x58] sm:$0xff]
    %v65 = vld [vmem:[%s0 + $0x60] sm:$0xff]
    %v66 = vld [vmem:[%s0 + $0x68] sm:$0xff]
    %v67 = vld [vmem:[%s0 + $0x70] sm:$0xff]
    %v68 = vld [vmem:[%s0 + $0x78] sm:$0xff]
    %v69 = vld [vmem:[%s1] sm:$0xff]
    %v70 = vld [vmem:[%s1 + $0x8] sm:$0xff]
    %v71 = vld [vmem:[%s1 + $0x10] sm:$0xff]
    %v72 = vld [vmem:[%s1 + $0x18] sm:$0xff]
    %v73 = vld [vmem:[%s1 + $0x20] sm:$0xff]
    %v74 = vld [vmem:[%s1 + $0x28] sm:$0xff]
    %v75 = vld [vmem:[%s1 + $0x30] sm:$0xff]
    %v76 = vld [vmem:[%s1 + $0x38] sm:$0xff]
    %v77 = vld [vmem:[%s1 + $0x40] sm:$0xff]
    %v78 = vld [vmem:[%s1 + $0x48] sm:$0xff]
    %v79 = vld [vmem:[%s1 + $0x50] sm:$0xff]
    %v80 = vld [vmem:[%s1 + $0x58] sm:$0xff]
    %v81 = vld [vmem:[%s1 + $0x60] sm:$0xff]
    %v82 = vld [vmem:[%s1 + $0x68] sm:$0xff]
    %v83 = vld [vmem:[%s1 + $0x70] sm:$0xff]
    %v84 = vld [vmem:[%s1 + $0x78] sm:$0xff]
    %vm85 = vcmask 64512
    %v86 = vsel %vm85, %v69, 0.0
    %87 = vadd.xlane.f32.xlu0 %v86
    %v88 = vpop.xlane.xlu0 %87
    %v89 = vsel %vm85, %v70, 0.0
    %90 = vadd.xlane.f32.xlu0 %v89
    %v91 = vpop.xlane.xlu0 %90
    %v92 = vsel %vm85, %v71, 0.0
    %93 = vadd.xlane.f32.xlu0 %v92
    %v94 = vpop.xlane.xlu0 %93
    %v95 = vsel %vm85, %v72, 0.0
    %96 = vadd.xlane.f32.xlu0 %v95
    %v97 = vpop.xlane.xlu0 %96
    %v98 = vsel %vm85, %v73, 0.0
    %99 = vadd.xlane.f32.xlu0 %v98
    %v100 = vpop.xlane.xlu0 %99
    %v101 = vsel %vm85, %v74, 0.0
    %102 = vadd.xlane.f32.xlu0 %v101
    %v103 = vpop.xlane.xlu0 %102
    %v104 = vsel %vm85, %v75, 0.0
    %105 = vadd.xlane.f32.xlu0 %v104
    %v106 = vpop.xlane.xlu0 %105
    %v107 = vsel %vm85, %v76, 0.0
    %108 = vadd.xlane.f32.xlu0 %v107
    %v109 = vpop.xlane.xlu0 %108
    %v110 = vsel %vm85, %v77, 0.0
    %111 = vadd.xlane.f32.xlu0 %v110
    %v112 = vpop.xlane.xlu0 %111
    %v113 = vsel %vm85, %v78, 0.0
    %114 = vadd.xlane.f32.xlu0 %v113
    %v115 = vpop.xlane.xlu0 %114
    %v116 = vsel %vm85, %v79, 0.0
    %117 = vadd.xlane.f32.xlu0 %v116
    %v118 = vpop.xlane.xlu0 %117
    %v119 = vsel %vm85, %v80, 0.0
    %120 = vadd.xlane.f32.xlu0 %v119
    %v121 = vpop.xlane.xlu0 %120
    %v122 = vsel %vm85, %v81, 0.0
    %123 = vadd.xlane.f32.xlu0 %v122
    %v124 = vpop.xlane.xlu0 %123
    %v125 = vsel %vm85, %v82, 0.0
    %126 = vadd.xlane.f32.xlu0 %v125
    %v127 = vpop.xlane.xlu0 %126
    %v128 = vsel %vm85, %v83, 0.0
    %129 = vadd.xlane.f32.xlu0 %v128
    %v130 = vpop.xlane.xlu0 %129
    %v131 = vsel %vm85, %v84, 0.0
    %132 = vadd.xlane.f32.xlu0 %v131
    %v133 = vpop.xlane.xlu0 %132
    %v134 = vmax.f32 %v88, 1.0
    %v135 = vmax.f32 %v91, 1.0
    %v136 = vmax.f32 %v94, 1.0
    %v137 = vmax.f32 %v97, 1.0
    %v138 = vmax.f32 %v100, 1.0
    %v139 = vmax.f32 %v103, 1.0
    %v140 = vmax.f32 %v106, 1.0
    %v141 = vmax.f32 %v109, 1.0
    %v142 = vmax.f32 %v112, 1.0
    %v143 = vmax.f32 %v115, 1.0
    %v144 = vmax.f32 %v118, 1.0
    %v145 = vmax.f32 %v121, 1.0
    %v146 = vmax.f32 %v124, 1.0
    %v147 = vmax.f32 %v127, 1.0
    %v148 = vmax.f32 %v130, 1.0
    %v149 = vmax.f32 %v133, 1.0
    %v150 = vrcp.pop %v134
    %v151 = vmul.f32 %v69, %v150
    %v152 = vrcp.pop %v135
    %v153 = vmul.f32 %v70, %v152
    %v154 = vrcp.pop %v136
    %v155 = vmul.f32 %v71, %v154
    %v156 = vrcp.pop %v137
    %v157 = vmul.f32 %v72, %v156
    %v158 = vrcp.pop %v138
    %v159 = vmul.f32 %v73, %v158
    %v160 = vrcp.pop %v139
    %v161 = vmul.f32 %v74, %v160
    %v162 = vrcp.pop %v140
    %v163 = vmul.f32 %v75, %v162
    %v164 = vrcp.pop %v141
    %v165 = vmul.f32 %v76, %v164
    %v166 = vrcp.pop %v142
    %v167 = vmul.f32 %v77, %v166
    %v168 = vrcp.pop %v143
    %v169 = vmul.f32 %v78, %v168
    %v170 = vrcp.pop %v144
    %v171 = vmul.f32 %v79, %v170
    %v172 = vrcp.pop %v145
    %v173 = vmul.f32 %v80, %v172
    %v174 = vrcp.pop %v146
    %v175 = vmul.f32 %v81, %v174
    %v176 = vrcp.pop %v147
    %v177 = vmul.f32 %v82, %v176
    %v178 = vrcp.pop %v148
    %v179 = vmul.f32 %v83, %v178
    %v180 = vrcp.pop %v149
    %v181 = vmul.f32 %v84, %v180
    %v182 = vlaneseq
    %v183 = vand.u32 %v182, 127
    %184 = vset.pattern.permute.xlu0 0
    %185 = vperm.xlu0 %184, %v53
    %v186 = vpop.permute.xlu0 %185
    %187 = vset.pattern.permute.xlu0 0
    %188 = vperm.xlu0 %187, %v54
    %v189 = vpop.permute.xlu0 %188
    %190 = vset.pattern.permute.xlu0 0
    %191 = vperm.xlu0 %190, %v55
    %v192 = vpop.permute.xlu0 %191
    %193 = vset.pattern.permute.xlu0 0
    %194 = vperm.xlu0 %193, %v56
    %v195 = vpop.permute.xlu0 %194
    %196 = vset.pattern.permute.xlu0 0
    %197 = vperm.xlu0 %196, %v57
    %v198 = vpop.permute.xlu0 %197
    %199 = vset.pattern.permute.xlu0 0
    %200 = vperm.xlu0 %199, %v58
    %v201 = vpop.permute.xlu0 %200
    %202 = vset.pattern.permute.xlu0 0
    %203 = vperm.xlu0 %202, %v59
    %v204 = vpop.permute.xlu0 %203
    %205 = vset.pattern.permute.xlu0 0
    %206 = vperm.xlu0 %205, %v60
    %v207 = vpop.permute.xlu0 %206
    %208 = vset.pattern.permute.xlu0 0
    %209 = vperm.xlu0 %208, %v61
    %v210 = vpop.permute.xlu0 %209
    %211 = vset.pattern.permute.xlu0 0
    %212 = vperm.xlu0 %211, %v62
    %v213 = vpop.permute.xlu0 %212
    %214 = vset.pattern.permute.xlu0 0
    %215 = vperm.xlu0 %214, %v63
    %v216 = vpop.permute.xlu0 %215
    %217 = vset.pattern.permute.xlu0 0
    %218 = vperm.xlu0 %217, %v64
    %v219 = vpop.permute.xlu0 %218
    %220 = vset.pattern.permute.xlu0 0
    %221 = vperm.xlu0 %220, %v65
    %v222 = vpop.permute.xlu0 %221
    %223 = vset.pattern.permute.xlu0 0
    %224 = vperm.xlu0 %223, %v66
    %v225 = vpop.permute.xlu0 %224
    %226 = vset.pattern.permute.xlu0 0
    %227 = vperm.xlu0 %226, %v67
    %v228 = vpop.permute.xlu0 %227
    %229 = vset.pattern.permute.xlu0 0
    %230 = vperm.xlu0 %229, %v68
    %v231 = vpop.permute.xlu0 %230
    %vm232 = vcmp.eq.s32.totalorder %v186, %v183
    %vm233 = vcmp.eq.s32.totalorder %v189, %v183
    %vm234 = vcmp.eq.s32.totalorder %v192, %v183
    %vm235 = vcmp.eq.s32.totalorder %v195, %v183
    %vm236 = vcmp.eq.s32.totalorder %v198, %v183
    %vm237 = vcmp.eq.s32.totalorder %v201, %v183
    %vm238 = vcmp.eq.s32.totalorder %v204, %v183
    %vm239 = vcmp.eq.s32.totalorder %v207, %v183
    %vm240 = vcmp.eq.s32.totalorder %v210, %v183
    %vm241 = vcmp.eq.s32.totalorder %v213, %v183
    %vm242 = vcmp.eq.s32.totalorder %v216, %v183
    %vm243 = vcmp.eq.s32.totalorder %v219, %v183
    %vm244 = vcmp.eq.s32.totalorder %v222, %v183
    %vm245 = vcmp.eq.s32.totalorder %v225, %v183
    %vm246 = vcmp.eq.s32.totalorder %v228, %v183
    %vm247 = vcmp.eq.s32.totalorder %v231, %v183
    %v248 = vadd.f32 %v151, 1.0
    %v249 = vadd.f32 %v153, 1.0
    %v250 = vadd.f32 %v155, 1.0
    %v251 = vadd.f32 %v157, 1.0
    %v252 = vadd.f32 %v159, 1.0
    %v253 = vadd.f32 %v161, 1.0
    %v254 = vadd.f32 %v163, 1.0
    %v255 = vadd.f32 %v165, 1.0
    %v256 = vadd.f32 %v167, 1.0
    %v257 = vadd.f32 %v169, 1.0
    %v258 = vadd.f32 %v171, 1.0
    %v259 = vadd.f32 %v173, 1.0
    %v260 = vadd.f32 %v175, 1.0
    %v261 = vadd.f32 %v177, 1.0
    %v262 = vadd.f32 %v179, 1.0
    %v263 = vadd.f32 %v181, 1.0
    %265 = vset.pattern.permute.xlu0 0
    %266 = vperm.xlu0 %265, %v248
    %v267 = vpop.permute.xlu0 %266
    %270 = vset.pattern.permute.xlu0 0
    %271 = vperm.xlu0 %270, %v249
    %v272 = vpop.permute.xlu0 %271
    %275 = vset.pattern.permute.xlu0 0
    %276 = vperm.xlu0 %275, %v250
    %v277 = vpop.permute.xlu0 %276
    %280 = vset.pattern.permute.xlu0 0
    %281 = vperm.xlu0 %280, %v251
    %v282 = vpop.permute.xlu0 %281
    %285 = vset.pattern.permute.xlu0 0
    %286 = vperm.xlu0 %285, %v252
    %v287 = vpop.permute.xlu0 %286
    %290 = vset.pattern.permute.xlu0 0
    %291 = vperm.xlu0 %290, %v253
    %v292 = vpop.permute.xlu0 %291
    %295 = vset.pattern.permute.xlu0 0
    %296 = vperm.xlu0 %295, %v254
    %v297 = vpop.permute.xlu0 %296
    %300 = vset.pattern.permute.xlu0 0
    %301 = vperm.xlu0 %300, %v255
    %v302 = vpop.permute.xlu0 %301
    %305 = vset.pattern.permute.xlu0 0
    %306 = vperm.xlu0 %305, %v256
    %v307 = vpop.permute.xlu0 %306
    %310 = vset.pattern.permute.xlu0 0
    %311 = vperm.xlu0 %310, %v257
    %v312 = vpop.permute.xlu0 %311
    %315 = vset.pattern.permute.xlu0 0
    %316 = vperm.xlu0 %315, %v258
    %v317 = vpop.permute.xlu0 %316
    %320 = vset.pattern.permute.xlu0 0
    %321 = vperm.xlu0 %320, %v259
    %v322 = vpop.permute.xlu0 %321
    %325 = vset.pattern.permute.xlu0 0
    %326 = vperm.xlu0 %325, %v260
    %v327 = vpop.permute.xlu0 %326
    %330 = vset.pattern.permute.xlu0 0
    %331 = vperm.xlu0 %330, %v261
    %v332 = vpop.permute.xlu0 %331
    %335 = vset.pattern.permute.xlu0 0
    %336 = vperm.xlu0 %335, %v262
    %v337 = vpop.permute.xlu0 %336
    %340 = vset.pattern.permute.xlu0 0
    %341 = vperm.xlu0 %340, %v263
    %v342 = vpop.permute.xlu0 %341
    %v344 = vsel %vm232, %v267, 0.0
    %v345 = vsel %vm233, %v272, 0.0
    %v346 = vsel %vm234, %v277, 0.0
    %v347 = vsel %vm235, %v282, 0.0
    %v348 = vsel %vm236, %v287, 0.0
    %v349 = vsel %vm237, %v292, 0.0
    %v350 = vsel %vm238, %v297, 0.0
    %v351 = vsel %vm239, %v302, 0.0
    %v352 = vsel %vm240, %v307, 0.0
    %v353 = vsel %vm241, %v312, 0.0
    %v354 = vsel %vm242, %v317, 0.0
    %v355 = vsel %vm243, %v322, 0.0
    %v356 = vsel %vm244, %v327, 0.0
    %v357 = vsel %vm245, %v332, 0.0
    %v358 = vsel %vm246, %v337, 0.0
    %v359 = vsel %vm247, %v342, 0.0
    %360 = vset.pattern.permute.xlu0 1
    %361 = vperm.xlu0 %360, %v53
    %v362 = vpop.permute.xlu0 %361
    %363 = vset.pattern.permute.xlu0 1
    %364 = vperm.xlu0 %363, %v54
    %v365 = vpop.permute.xlu0 %364
    %366 = vset.pattern.permute.xlu0 1
    %367 = vperm.xlu0 %366, %v55
    %v368 = vpop.permute.xlu0 %367
    %369 = vset.pattern.permute.xlu0 1
    %370 = vperm.xlu0 %369, %v56
    %v371 = vpop.permute.xlu0 %370
    %372 = vset.pattern.permute.xlu0 1
    %373 = vperm.xlu0 %372, %v57
    %v374 = vpop.permute.xlu0 %373
    %375 = vset.pattern.permute.xlu0 1
    %376 = vperm.xlu0 %375, %v58
    %v377 = vpop.permute.xlu0 %376
    %378 = vset.pattern.permute.xlu0 1
    %379 = vperm.xlu0 %378, %v59
    %v380 = vpop.permute.xlu0 %379
    %381 = vset.pattern.permute.xlu0 1
    %382 = vperm.xlu0 %381, %v60
    %v383 = vpop.permute.xlu0 %382
    %384 = vset.pattern.permute.xlu0 1
    %385 = vperm.xlu0 %384, %v61
    %v386 = vpop.permute.xlu0 %385
    %387 = vset.pattern.permute.xlu0 1
    %388 = vperm.xlu0 %387, %v62
    %v389 = vpop.permute.xlu0 %388
    %390 = vset.pattern.permute.xlu0 1
    %391 = vperm.xlu0 %390, %v63
    %v392 = vpop.permute.xlu0 %391
    %393 = vset.pattern.permute.xlu0 1
    %394 = vperm.xlu0 %393, %v64
    %v395 = vpop.permute.xlu0 %394
    %396 = vset.pattern.permute.xlu0 1
    %397 = vperm.xlu0 %396, %v65
    %v398 = vpop.permute.xlu0 %397
    %399 = vset.pattern.permute.xlu0 1
    %400 = vperm.xlu0 %399, %v66
    %v401 = vpop.permute.xlu0 %400
    %402 = vset.pattern.permute.xlu0 1
    %403 = vperm.xlu0 %402, %v67
    %v404 = vpop.permute.xlu0 %403
    %405 = vset.pattern.permute.xlu0 1
    %406 = vperm.xlu0 %405, %v68
    %v407 = vpop.permute.xlu0 %406
    %vm408 = vcmp.eq.s32.totalorder %v362, %v183
    %vm409 = vcmp.eq.s32.totalorder %v365, %v183
    %vm410 = vcmp.eq.s32.totalorder %v368, %v183
    %vm411 = vcmp.eq.s32.totalorder %v371, %v183
    %vm412 = vcmp.eq.s32.totalorder %v374, %v183
    %vm413 = vcmp.eq.s32.totalorder %v377, %v183
    %vm414 = vcmp.eq.s32.totalorder %v380, %v183
    %vm415 = vcmp.eq.s32.totalorder %v383, %v183
    %vm416 = vcmp.eq.s32.totalorder %v386, %v183
    %vm417 = vcmp.eq.s32.totalorder %v389, %v183
    %vm418 = vcmp.eq.s32.totalorder %v392, %v183
    %vm419 = vcmp.eq.s32.totalorder %v395, %v183
    %vm420 = vcmp.eq.s32.totalorder %v398, %v183
    %vm421 = vcmp.eq.s32.totalorder %v401, %v183
    %vm422 = vcmp.eq.s32.totalorder %v404, %v183
    %vm423 = vcmp.eq.s32.totalorder %v407, %v183
    %425 = vset.pattern.permute.xlu0 1
    %426 = vperm.xlu0 %425, %v151
    %v427 = vpop.permute.xlu0 %426
    %430 = vset.pattern.permute.xlu0 1
    %431 = vperm.xlu0 %430, %v153
    %v432 = vpop.permute.xlu0 %431
    %435 = vset.pattern.permute.xlu0 1
    %436 = vperm.xlu0 %435, %v155
    %v437 = vpop.permute.xlu0 %436
    %440 = vset.pattern.permute.xlu0 1
    %441 = vperm.xlu0 %440, %v157
    %v442 = vpop.permute.xlu0 %441
    %445 = vset.pattern.permute.xlu0 1
    %446 = vperm.xlu0 %445, %v159
    %v447 = vpop.permute.xlu0 %446
    %450 = vset.pattern.permute.xlu0 1
    %451 = vperm.xlu0 %450, %v161
    %v452 = vpop.permute.xlu0 %451
    %455 = vset.pattern.permute.xlu0 1
    %456 = vperm.xlu0 %455, %v163
    %v457 = vpop.permute.xlu0 %456
    %460 = vset.pattern.permute.xlu0 1
    %461 = vperm.xlu0 %460, %v165
    %v462 = vpop.permute.xlu0 %461
    %465 = vset.pattern.permute.xlu0 1
    %466 = vperm.xlu0 %465, %v167
    %v467 = vpop.permute.xlu0 %466
    %470 = vset.pattern.permute.xlu0 1
    %471 = vperm.xlu0 %470, %v169
    %v472 = vpop.permute.xlu0 %471
    %475 = vset.pattern.permute.xlu0 1
    %476 = vperm.xlu0 %475, %v171
    %v477 = vpop.permute.xlu0 %476
    %480 = vset.pattern.permute.xlu0 1
    %481 = vperm.xlu0 %480, %v173
    %v482 = vpop.permute.xlu0 %481
    %485 = vset.pattern.permute.xlu0 1
    %486 = vperm.xlu0 %485, %v175
    %v487 = vpop.permute.xlu0 %486
    %490 = vset.pattern.permute.xlu0 1
    %491 = vperm.xlu0 %490, %v177
    %v492 = vpop.permute.xlu0 %491
    %495 = vset.pattern.permute.xlu0 1
    %496 = vperm.xlu0 %495, %v179
    %v497 = vpop.permute.xlu0 %496
    %500 = vset.pattern.permute.xlu0 1
    %501 = vperm.xlu0 %500, %v181
    %v502 = vpop.permute.xlu0 %501
    %v504 = vsel %vm408, %v427, 0.0
    %v505 = vsel %vm409, %v432, 0.0
    %v506 = vsel %vm410, %v437, 0.0
    %v507 = vsel %vm411, %v442, 0.0
    %v508 = vsel %vm412, %v447, 0.0
    %v509 = vsel %vm413, %v452, 0.0
    %v510 = vsel %vm414, %v457, 0.0
    %v511 = vsel %vm415, %v462, 0.0
    %v512 = vsel %vm416, %v467, 0.0
    %v513 = vsel %vm417, %v472, 0.0
    %v514 = vsel %vm418, %v477, 0.0
    %v515 = vsel %vm419, %v482, 0.0
    %v516 = vsel %vm420, %v487, 0.0
    %v517 = vsel %vm421, %v492, 0.0
    %v518 = vsel %vm422, %v497, 0.0
    %v519 = vsel %vm423, %v502, 0.0
    %v520 = vadd.f32 %v344, %v504
    %v521 = vadd.f32 %v345, %v505
    %v522 = vadd.f32 %v346, %v506
    %v523 = vadd.f32 %v347, %v507
    %v524 = vadd.f32 %v348, %v508
    %v525 = vadd.f32 %v349, %v509
    %v526 = vadd.f32 %v350, %v510
    %v527 = vadd.f32 %v351, %v511
    %v528 = vadd.f32 %v352, %v512
    %v529 = vadd.f32 %v353, %v513
    %v530 = vadd.f32 %v354, %v514
    %v531 = vadd.f32 %v355, %v515
    %v532 = vadd.f32 %v356, %v516
    %v533 = vadd.f32 %v357, %v517
    %v534 = vadd.f32 %v358, %v518
    %v535 = vadd.f32 %v359, %v519
    %536 = vset.pattern.permute.xlu0 2
    %537 = vperm.xlu0 %536, %v53
    %v538 = vpop.permute.xlu0 %537
    %539 = vset.pattern.permute.xlu0 2
    %540 = vperm.xlu0 %539, %v54
    %v541 = vpop.permute.xlu0 %540
    %542 = vset.pattern.permute.xlu0 2
    %543 = vperm.xlu0 %542, %v55
    %v544 = vpop.permute.xlu0 %543
    %545 = vset.pattern.permute.xlu0 2
    %546 = vperm.xlu0 %545, %v56
    %v547 = vpop.permute.xlu0 %546
    %548 = vset.pattern.permute.xlu0 2
    %549 = vperm.xlu0 %548, %v57
    %v550 = vpop.permute.xlu0 %549
    %551 = vset.pattern.permute.xlu0 2
    %552 = vperm.xlu0 %551, %v58
    %v553 = vpop.permute.xlu0 %552
    %554 = vset.pattern.permute.xlu0 2
    %555 = vperm.xlu0 %554, %v59
    %v556 = vpop.permute.xlu0 %555
    %557 = vset.pattern.permute.xlu0 2
    %558 = vperm.xlu0 %557, %v60
    %v559 = vpop.permute.xlu0 %558
    %560 = vset.pattern.permute.xlu0 2
    %561 = vperm.xlu0 %560, %v61
    %v562 = vpop.permute.xlu0 %561
    %563 = vset.pattern.permute.xlu0 2
    %564 = vperm.xlu0 %563, %v62
    %v565 = vpop.permute.xlu0 %564
    %566 = vset.pattern.permute.xlu0 2
    %567 = vperm.xlu0 %566, %v63
    %v568 = vpop.permute.xlu0 %567
    %569 = vset.pattern.permute.xlu0 2
    %570 = vperm.xlu0 %569, %v64
    %v571 = vpop.permute.xlu0 %570
    %572 = vset.pattern.permute.xlu0 2
    %573 = vperm.xlu0 %572, %v65
    %v574 = vpop.permute.xlu0 %573
    %575 = vset.pattern.permute.xlu0 2
    %576 = vperm.xlu0 %575, %v66
    %v577 = vpop.permute.xlu0 %576
    %578 = vset.pattern.permute.xlu0 2
    %579 = vperm.xlu0 %578, %v67
    %v580 = vpop.permute.xlu0 %579
    %581 = vset.pattern.permute.xlu0 2
    %582 = vperm.xlu0 %581, %v68
    %v583 = vpop.permute.xlu0 %582
    %vm584 = vcmp.eq.s32.totalorder %v538, %v183
    %vm585 = vcmp.eq.s32.totalorder %v541, %v183
    %vm586 = vcmp.eq.s32.totalorder %v544, %v183
    %vm587 = vcmp.eq.s32.totalorder %v547, %v183
    %vm588 = vcmp.eq.s32.totalorder %v550, %v183
    %vm589 = vcmp.eq.s32.totalorder %v553, %v183
    %vm590 = vcmp.eq.s32.totalorder %v556, %v183
    %vm591 = vcmp.eq.s32.totalorder %v559, %v183
    %vm592 = vcmp.eq.s32.totalorder %v562, %v183
    %vm593 = vcmp.eq.s32.totalorder %v565, %v183
    %vm594 = vcmp.eq.s32.totalorder %v568, %v183
    %vm595 = vcmp.eq.s32.totalorder %v571, %v183
    %vm596 = vcmp.eq.s32.totalorder %v574, %v183
    %vm597 = vcmp.eq.s32.totalorder %v577, %v183
    %vm598 = vcmp.eq.s32.totalorder %v580, %v183
    %vm599 = vcmp.eq.s32.totalorder %v583, %v183
    %600 = vset.pattern.permute.xlu0 2
    %601 = vperm.xlu0 %600, %v151
    %v602 = vpop.permute.xlu0 %601
    %604 = vset.pattern.permute.xlu0 2
    %605 = vperm.xlu0 %604, %v153
    %v606 = vpop.permute.xlu0 %605
    %608 = vset.pattern.permute.xlu0 2
    %609 = vperm.xlu0 %608, %v155
    %v610 = vpop.permute.xlu0 %609
    %612 = vset.pattern.permute.xlu0 2
    %613 = vperm.xlu0 %612, %v157
    %v614 = vpop.permute.xlu0 %613
    %616 = vset.pattern.permute.xlu0 2
    %617 = vperm.xlu0 %616, %v159
    %v618 = vpop.permute.xlu0 %617
    %620 = vset.pattern.permute.xlu0 2
    %621 = vperm.xlu0 %620, %v161
    %v622 = vpop.permute.xlu0 %621
    %624 = vset.pattern.permute.xlu0 2
    %625 = vperm.xlu0 %624, %v163
    %v626 = vpop.permute.xlu0 %625
    %628 = vset.pattern.permute.xlu0 2
    %629 = vperm.xlu0 %628, %v165
    %v630 = vpop.permute.xlu0 %629
    %632 = vset.pattern.permute.xlu0 2
    %633 = vperm.xlu0 %632, %v167
    %v634 = vpop.permute.xlu0 %633
    %636 = vset.pattern.permute.xlu0 2
    %637 = vperm.xlu0 %636, %v169
    %v638 = vpop.permute.xlu0 %637
    %640 = vset.pattern.permute.xlu0 2
    %641 = vperm.xlu0 %640, %v171
    %v642 = vpop.permute.xlu0 %641
    %644 = vset.pattern.permute.xlu0 2
    %645 = vperm.xlu0 %644, %v173
    %v646 = vpop.permute.xlu0 %645
    %648 = vset.pattern.permute.xlu0 2
    %649 = vperm.xlu0 %648, %v175
    %v650 = vpop.permute.xlu0 %649
    %652 = vset.pattern.permute.xlu0 2
    %653 = vperm.xlu0 %652, %v177
    %v654 = vpop.permute.xlu0 %653
    %656 = vset.pattern.permute.xlu0 2
    %657 = vperm.xlu0 %656, %v179
    %v658 = vpop.permute.xlu0 %657
    %660 = vset.pattern.permute.xlu0 2
    %661 = vperm.xlu0 %660, %v181
    %v662 = vpop.permute.xlu0 %661
    %v664 = vsel %vm584, %v602, 0.0
    %v665 = vsel %vm585, %v606, 0.0
    %v666 = vsel %vm586, %v610, 0.0
    %v667 = vsel %vm587, %v614, 0.0
    %v668 = vsel %vm588, %v618, 0.0
    %v669 = vsel %vm589, %v622, 0.0
    %v670 = vsel %vm590, %v626, 0.0
    %v671 = vsel %vm591, %v630, 0.0
    %v672 = vsel %vm592, %v634, 0.0
    %v673 = vsel %vm593, %v638, 0.0
    %v674 = vsel %vm594, %v642, 0.0
    %v675 = vsel %vm595, %v646, 0.0
    %v676 = vsel %vm596, %v650, 0.0
    %v677 = vsel %vm597, %v654, 0.0
    %v678 = vsel %vm598, %v658, 0.0
    %v679 = vsel %vm599, %v662, 0.0
    %v680 = vadd.f32 %v520, %v664
    %v681 = vadd.f32 %v521, %v665
    %v682 = vadd.f32 %v522, %v666
    %v683 = vadd.f32 %v523, %v667
    %v684 = vadd.f32 %v524, %v668
    %v685 = vadd.f32 %v525, %v669
    %v686 = vadd.f32 %v526, %v670
    %v687 = vadd.f32 %v527, %v671
    %v688 = vadd.f32 %v528, %v672
    %v689 = vadd.f32 %v529, %v673
    %v690 = vadd.f32 %v530, %v674
    %v691 = vadd.f32 %v531, %v675
    %v692 = vadd.f32 %v532, %v676
    %v693 = vadd.f32 %v533, %v677
    %v694 = vadd.f32 %v534, %v678
    %v695 = vadd.f32 %v535, %v679
    %696 = vset.pattern.permute.xlu0 3
    %697 = vperm.xlu0 %696, %v53
    %v698 = vpop.permute.xlu0 %697
    %699 = vset.pattern.permute.xlu0 3
    %700 = vperm.xlu0 %699, %v54
    %v701 = vpop.permute.xlu0 %700
    %702 = vset.pattern.permute.xlu0 3
    %703 = vperm.xlu0 %702, %v55
    %v704 = vpop.permute.xlu0 %703
    %705 = vset.pattern.permute.xlu0 3
    %706 = vperm.xlu0 %705, %v56
    %v707 = vpop.permute.xlu0 %706
    %708 = vset.pattern.permute.xlu0 3
    %709 = vperm.xlu0 %708, %v57
    %v710 = vpop.permute.xlu0 %709
    %711 = vset.pattern.permute.xlu0 3
    %712 = vperm.xlu0 %711, %v58
    %v713 = vpop.permute.xlu0 %712
    %714 = vset.pattern.permute.xlu0 3
    %715 = vperm.xlu0 %714, %v59
    %v716 = vpop.permute.xlu0 %715
    %717 = vset.pattern.permute.xlu0 3
    %718 = vperm.xlu0 %717, %v60
    %v719 = vpop.permute.xlu0 %718
    %720 = vset.pattern.permute.xlu0 3
    %721 = vperm.xlu0 %720, %v61
    %v722 = vpop.permute.xlu0 %721
    %723 = vset.pattern.permute.xlu0 3
    %724 = vperm.xlu0 %723, %v62
    %v725 = vpop.permute.xlu0 %724
    %726 = vset.pattern.permute.xlu0 3
    %727 = vperm.xlu0 %726, %v63
    %v728 = vpop.permute.xlu0 %727
    %729 = vset.pattern.permute.xlu0 3
    %730 = vperm.xlu0 %729, %v64
    %v731 = vpop.permute.xlu0 %730
    %732 = vset.pattern.permute.xlu0 3
    %733 = vperm.xlu0 %732, %v65
    %v734 = vpop.permute.xlu0 %733
    %735 = vset.pattern.permute.xlu0 3
    %736 = vperm.xlu0 %735, %v66
    %v737 = vpop.permute.xlu0 %736
    %738 = vset.pattern.permute.xlu0 3
    %739 = vperm.xlu0 %738, %v67
    %v740 = vpop.permute.xlu0 %739
    %741 = vset.pattern.permute.xlu0 3
    %742 = vperm.xlu0 %741, %v68
    %v743 = vpop.permute.xlu0 %742
    %vm744 = vcmp.eq.s32.totalorder %v698, %v183
    %vm745 = vcmp.eq.s32.totalorder %v701, %v183
    %vm746 = vcmp.eq.s32.totalorder %v704, %v183
    %vm747 = vcmp.eq.s32.totalorder %v707, %v183
    %vm748 = vcmp.eq.s32.totalorder %v710, %v183
    %vm749 = vcmp.eq.s32.totalorder %v713, %v183
    %vm750 = vcmp.eq.s32.totalorder %v716, %v183
    %vm751 = vcmp.eq.s32.totalorder %v719, %v183
    %vm752 = vcmp.eq.s32.totalorder %v722, %v183
    %vm753 = vcmp.eq.s32.totalorder %v725, %v183
    %vm754 = vcmp.eq.s32.totalorder %v728, %v183
    %vm755 = vcmp.eq.s32.totalorder %v731, %v183
    %vm756 = vcmp.eq.s32.totalorder %v734, %v183
    %vm757 = vcmp.eq.s32.totalorder %v737, %v183
    %vm758 = vcmp.eq.s32.totalorder %v740, %v183
    %vm759 = vcmp.eq.s32.totalorder %v743, %v183
    %760 = vset.pattern.permute.xlu0 3
    %761 = vperm.xlu0 %760, %v151
    %v762 = vpop.permute.xlu0 %761
    %764 = vset.pattern.permute.xlu0 3
    %765 = vperm.xlu0 %764, %v153
    %v766 = vpop.permute.xlu0 %765
    %768 = vset.pattern.permute.xlu0 3
    %769 = vperm.xlu0 %768, %v155
    %v770 = vpop.permute.xlu0 %769
    %772 = vset.pattern.permute.xlu0 3
    %773 = vperm.xlu0 %772, %v157
    %v774 = vpop.permute.xlu0 %773
    %776 = vset.pattern.permute.xlu0 3
    %777 = vperm.xlu0 %776, %v159
    %v778 = vpop.permute.xlu0 %777
    %780 = vset.pattern.permute.xlu0 3
    %781 = vperm.xlu0 %780, %v161
    %v782 = vpop.permute.xlu0 %781
    %784 = vset.pattern.permute.xlu0 3
    %785 = vperm.xlu0 %784, %v163
    %v786 = vpop.permute.xlu0 %785
    %788 = vset.pattern.permute.xlu0 3
    %789 = vperm.xlu0 %788, %v165
    %v790 = vpop.permute.xlu0 %789
    %792 = vset.pattern.permute.xlu0 3
    %793 = vperm.xlu0 %792, %v167
    %v794 = vpop.permute.xlu0 %793
    %796 = vset.pattern.permute.xlu0 3
    %797 = vperm.xlu0 %796, %v169
    %v798 = vpop.permute.xlu0 %797
    %800 = vset.pattern.permute.xlu0 3
    %801 = vperm.xlu0 %800, %v171
    %v802 = vpop.permute.xlu0 %801
    %804 = vset.pattern.permute.xlu0 3
    %805 = vperm.xlu0 %804, %v173
    %v806 = vpop.permute.xlu0 %805
    %808 = vset.pattern.permute.xlu0 3
    %809 = vperm.xlu0 %808, %v175
    %v810 = vpop.permute.xlu0 %809
    %812 = vset.pattern.permute.xlu0 3
    %813 = vperm.xlu0 %812, %v177
    %v814 = vpop.permute.xlu0 %813
    %816 = vset.pattern.permute.xlu0 3
    %817 = vperm.xlu0 %816, %v179
    %v818 = vpop.permute.xlu0 %817
    %820 = vset.pattern.permute.xlu0 3
    %821 = vperm.xlu0 %820, %v181
    %v822 = vpop.permute.xlu0 %821
    %v824 = vsel %vm744, %v762, 0.0
    %v825 = vsel %vm745, %v766, 0.0
    %v826 = vsel %vm746, %v770, 0.0
    %v827 = vsel %vm747, %v774, 0.0
    %v828 = vsel %vm748, %v778, 0.0
    %v829 = vsel %vm749, %v782, 0.0
    %v830 = vsel %vm750, %v786, 0.0
    %v831 = vsel %vm751, %v790, 0.0
    %v832 = vsel %vm752, %v794, 0.0
    %v833 = vsel %vm753, %v798, 0.0
    %v834 = vsel %vm754, %v802, 0.0
    %v835 = vsel %vm755, %v806, 0.0
    %v836 = vsel %vm756, %v810, 0.0
    %v837 = vsel %vm757, %v814, 0.0
    %v838 = vsel %vm758, %v818, 0.0
    %v839 = vsel %vm759, %v822, 0.0
    %v840 = vadd.f32 %v680, %v824
    %v841 = vadd.f32 %v681, %v825
    %v842 = vadd.f32 %v682, %v826
    %v843 = vadd.f32 %v683, %v827
    %v844 = vadd.f32 %v684, %v828
    %v845 = vadd.f32 %v685, %v829
    %v846 = vadd.f32 %v686, %v830
    %v847 = vadd.f32 %v687, %v831
    %v848 = vadd.f32 %v688, %v832
    %v849 = vadd.f32 %v689, %v833
    %v850 = vadd.f32 %v690, %v834
    %v851 = vadd.f32 %v691, %v835
    %v852 = vadd.f32 %v692, %v836
    %v853 = vadd.f32 %v693, %v837
    %v854 = vadd.f32 %v694, %v838
    %v855 = vadd.f32 %v695, %v839
    %856 = vset.pattern.permute.xlu0 4
    %857 = vperm.xlu0 %856, %v53
    %v858 = vpop.permute.xlu0 %857
    %859 = vset.pattern.permute.xlu0 4
    %860 = vperm.xlu0 %859, %v54
    %v861 = vpop.permute.xlu0 %860
    %862 = vset.pattern.permute.xlu0 4
    %863 = vperm.xlu0 %862, %v55
    %v864 = vpop.permute.xlu0 %863
    %865 = vset.pattern.permute.xlu0 4
    %866 = vperm.xlu0 %865, %v56
    %v867 = vpop.permute.xlu0 %866
    %868 = vset.pattern.permute.xlu0 4
    %869 = vperm.xlu0 %868, %v57
    %v870 = vpop.permute.xlu0 %869
    %871 = vset.pattern.permute.xlu0 4
    %872 = vperm.xlu0 %871, %v58
    %v873 = vpop.permute.xlu0 %872
    %874 = vset.pattern.permute.xlu0 4
    %875 = vperm.xlu0 %874, %v59
    %v876 = vpop.permute.xlu0 %875
    %877 = vset.pattern.permute.xlu0 4
    %878 = vperm.xlu0 %877, %v60
    %v879 = vpop.permute.xlu0 %878
    %880 = vset.pattern.permute.xlu0 4
    %881 = vperm.xlu0 %880, %v61
    %v882 = vpop.permute.xlu0 %881
    %883 = vset.pattern.permute.xlu0 4
    %884 = vperm.xlu0 %883, %v62
    %v885 = vpop.permute.xlu0 %884
    %886 = vset.pattern.permute.xlu0 4
    %887 = vperm.xlu0 %886, %v63
    %v888 = vpop.permute.xlu0 %887
    %889 = vset.pattern.permute.xlu0 4
    %890 = vperm.xlu0 %889, %v64
    %v891 = vpop.permute.xlu0 %890
    %892 = vset.pattern.permute.xlu0 4
    %893 = vperm.xlu0 %892, %v65
    %v894 = vpop.permute.xlu0 %893
    %895 = vset.pattern.permute.xlu0 4
    %896 = vperm.xlu0 %895, %v66
    %v897 = vpop.permute.xlu0 %896
    %898 = vset.pattern.permute.xlu0 4
    %899 = vperm.xlu0 %898, %v67
    %v900 = vpop.permute.xlu0 %899
    %901 = vset.pattern.permute.xlu0 4
    %902 = vperm.xlu0 %901, %v68
    %v903 = vpop.permute.xlu0 %902
    %vm904 = vcmp.eq.s32.totalorder %v858, %v183
    %vm905 = vcmp.eq.s32.totalorder %v861, %v183
    %vm906 = vcmp.eq.s32.totalorder %v864, %v183
    %vm907 = vcmp.eq.s32.totalorder %v867, %v183
    %vm908 = vcmp.eq.s32.totalorder %v870, %v183
    %vm909 = vcmp.eq.s32.totalorder %v873, %v183
    %vm910 = vcmp.eq.s32.totalorder %v876, %v183
    %vm911 = vcmp.eq.s32.totalorder %v879, %v183
    %vm912 = vcmp.eq.s32.totalorder %v882, %v183
    %vm913 = vcmp.eq.s32.totalorder %v885, %v183
    %vm914 = vcmp.eq.s32.totalorder %v888, %v183
    %vm915 = vcmp.eq.s32.totalorder %v891, %v183
    %vm916 = vcmp.eq.s32.totalorder %v894, %v183
    %vm917 = vcmp.eq.s32.totalorder %v897, %v183
    %vm918 = vcmp.eq.s32.totalorder %v900, %v183
    %vm919 = vcmp.eq.s32.totalorder %v903, %v183
    %920 = vset.pattern.permute.xlu0 4
    %921 = vperm.xlu0 %920, %v151
    %v922 = vpop.permute.xlu0 %921
    %924 = vset.pattern.permute.xlu0 4
    %925 = vperm.xlu0 %924, %v153
    %v926 = vpop.permute.xlu0 %925
    %928 = vset.pattern.permute.xlu0 4
    %929 = vperm.xlu0 %928, %v155
    %v930 = vpop.permute.xlu0 %929
    %932 = vset.pattern.permute.xlu0 4
    %933 = vperm.xlu0 %932, %v157
    %v934 = vpop.permute.xlu0 %933
    %936 = vset.pattern.permute.xlu0 4
    %937 = vperm.xlu0 %936, %v159
    %v938 = vpop.permute.xlu0 %937
    %940 = vset.pattern.permute.xlu0 4
    %941 = vperm.xlu0 %940, %v161
    %v942 = vpop.permute.xlu0 %941
    %944 = vset.pattern.permute.xlu0 4
    %945 = vperm.xlu0 %944, %v163
    %v946 = vpop.permute.xlu0 %945
    %948 = vset.pattern.permute.xlu0 4
    %949 = vperm.xlu0 %948, %v165
    %v950 = vpop.permute.xlu0 %949
    %952 = vset.pattern.permute.xlu0 4
    %953 = vperm.xlu0 %952, %v167
    %v954 = vpop.permute.xlu0 %953
    %956 = vset.pattern.permute.xlu0 4
    %957 = vperm.xlu0 %956, %v169
    %v958 = vpop.permute.xlu0 %957
    %960 = vset.pattern.permute.xlu0 4
    %961 = vperm.xlu0 %960, %v171
    %v962 = vpop.permute.xlu0 %961
    %964 = vset.pattern.permute.xlu0 4
    %965 = vperm.xlu0 %964, %v173
    %v966 = vpop.permute.xlu0 %965
    %968 = vset.pattern.permute.xlu0 4
    %969 = vperm.xlu0 %968, %v175
    %v970 = vpop.permute.xlu0 %969
    %972 = vset.pattern.permute.xlu0 4
    %973 = vperm.xlu0 %972, %v177
    %v974 = vpop.permute.xlu0 %973
    %976 = vset.pattern.permute.xlu0 4
    %977 = vperm.xlu0 %976, %v179
    %v978 = vpop.permute.xlu0 %977
    %980 = vset.pattern.permute.xlu0 4
    %981 = vperm.xlu0 %980, %v181
    %v982 = vpop.permute.xlu0 %981
    %v984 = vsel %vm904, %v922, 0.0
    %v985 = vsel %vm905, %v926, 0.0
    %v986 = vsel %vm906, %v930, 0.0
    %v987 = vsel %vm907, %v934, 0.0
    %v988 = vsel %vm908, %v938, 0.0
    %v989 = vsel %vm909, %v942, 0.0
    %v990 = vsel %vm910, %v946, 0.0
    %v991 = vsel %vm911, %v950, 0.0
    %v992 = vsel %vm912, %v954, 0.0
    %v993 = vsel %vm913, %v958, 0.0
    %v994 = vsel %vm914, %v962, 0.0
    %v995 = vsel %vm915, %v966, 0.0
    %v996 = vsel %vm916, %v970, 0.0
    %v997 = vsel %vm917, %v974, 0.0
    %v998 = vsel %vm918, %v978, 0.0
    %v999 = vsel %vm919, %v982, 0.0
    %v1000 = vadd.f32 %v840, %v984
    %v1001 = vadd.f32 %v841, %v985
    %v1002 = vadd.f32 %v842, %v986
    %v1003 = vadd.f32 %v843, %v987
    %v1004 = vadd.f32 %v844, %v988
    %v1005 = vadd.f32 %v845, %v989
    %v1006 = vadd.f32 %v846, %v990
    %v1007 = vadd.f32 %v847, %v991
    %v1008 = vadd.f32 %v848, %v992
    %v1009 = vadd.f32 %v849, %v993
    %v1010 = vadd.f32 %v850, %v994
    %v1011 = vadd.f32 %v851, %v995
    %v1012 = vadd.f32 %v852, %v996
    %v1013 = vadd.f32 %v853, %v997
    %v1014 = vadd.f32 %v854, %v998
    %v1015 = vadd.f32 %v855, %v999
    %1016 = vset.pattern.permute.xlu0 5
    %1017 = vperm.xlu0 %1016, %v53
    %v1018 = vpop.permute.xlu0 %1017
    %1019 = vset.pattern.permute.xlu0 5
    %1020 = vperm.xlu0 %1019, %v54
    %v1021 = vpop.permute.xlu0 %1020
    %1022 = vset.pattern.permute.xlu0 5
    %1023 = vperm.xlu0 %1022, %v55
    %v1024 = vpop.permute.xlu0 %1023
    %1025 = vset.pattern.permute.xlu0 5
    %1026 = vperm.xlu0 %1025, %v56
    %v1027 = vpop.permute.xlu0 %1026
    %1028 = vset.pattern.permute.xlu0 5
    %1029 = vperm.xlu0 %1028, %v57
    %v1030 = vpop.permute.xlu0 %1029
    %1031 = vset.pattern.permute.xlu0 5
    %1032 = vperm.xlu0 %1031, %v58
    %v1033 = vpop.permute.xlu0 %1032
    %1034 = vset.pattern.permute.xlu0 5
    %1035 = vperm.xlu0 %1034, %v59
    %v1036 = vpop.permute.xlu0 %1035
    %1037 = vset.pattern.permute.xlu0 5
    %1038 = vperm.xlu0 %1037, %v60
    %v1039 = vpop.permute.xlu0 %1038
    %1040 = vset.pattern.permute.xlu0 5
    %1041 = vperm.xlu0 %1040, %v61
    %v1042 = vpop.permute.xlu0 %1041
    %1043 = vset.pattern.permute.xlu0 5
    %1044 = vperm.xlu0 %1043, %v62
    %v1045 = vpop.permute.xlu0 %1044
    %1046 = vset.pattern.permute.xlu0 5
    %1047 = vperm.xlu0 %1046, %v63
    %v1048 = vpop.permute.xlu0 %1047
    %1049 = vset.pattern.permute.xlu0 5
    %1050 = vperm.xlu0 %1049, %v64
    %v1051 = vpop.permute.xlu0 %1050
    %1052 = vset.pattern.permute.xlu0 5
    %1053 = vperm.xlu0 %1052, %v65
    %v1054 = vpop.permute.xlu0 %1053
    %1055 = vset.pattern.permute.xlu0 5
    %1056 = vperm.xlu0 %1055, %v66
    %v1057 = vpop.permute.xlu0 %1056
    %1058 = vset.pattern.permute.xlu0 5
    %1059 = vperm.xlu0 %1058, %v67
    %v1060 = vpop.permute.xlu0 %1059
    %1061 = vset.pattern.permute.xlu0 5
    %1062 = vperm.xlu0 %1061, %v68
    %v1063 = vpop.permute.xlu0 %1062
    %vm1064 = vcmp.eq.s32.totalorder %v1018, %v183
    %vm1065 = vcmp.eq.s32.totalorder %v1021, %v183
    %vm1066 = vcmp.eq.s32.totalorder %v1024, %v183
    %vm1067 = vcmp.eq.s32.totalorder %v1027, %v183
    %vm1068 = vcmp.eq.s32.totalorder %v1030, %v183
    %vm1069 = vcmp.eq.s32.totalorder %v1033, %v183
    %vm1070 = vcmp.eq.s32.totalorder %v1036, %v183
    %vm1071 = vcmp.eq.s32.totalorder %v1039, %v183
    %vm1072 = vcmp.eq.s32.totalorder %v1042, %v183
    %vm1073 = vcmp.eq.s32.totalorder %v1045, %v183
    %vm1074 = vcmp.eq.s32.totalorder %v1048, %v183
    %vm1075 = vcmp.eq.s32.totalorder %v1051, %v183
    %vm1076 = vcmp.eq.s32.totalorder %v1054, %v183
    %vm1077 = vcmp.eq.s32.totalorder %v1057, %v183
    %vm1078 = vcmp.eq.s32.totalorder %v1060, %v183
    %vm1079 = vcmp.eq.s32.totalorder %v1063, %v183
    %1080 = vset.pattern.permute.xlu0 5
    %1081 = vperm.xlu0 %1080, %v151
    %v1082 = vpop.permute.xlu0 %1081
    %1084 = vset.pattern.permute.xlu0 5
    %1085 = vperm.xlu0 %1084, %v153
    %v1086 = vpop.permute.xlu0 %1085
    %1088 = vset.pattern.permute.xlu0 5
    %1089 = vperm.xlu0 %1088, %v155
    %v1090 = vpop.permute.xlu0 %1089
    %1092 = vset.pattern.permute.xlu0 5
    %1093 = vperm.xlu0 %1092, %v157
    %v1094 = vpop.permute.xlu0 %1093
    %1096 = vset.pattern.permute.xlu0 5
    %1097 = vperm.xlu0 %1096, %v159
    %v1098 = vpop.permute.xlu0 %1097
    %1100 = vset.pattern.permute.xlu0 5
    %1101 = vperm.xlu0 %1100, %v161
    %v1102 = vpop.permute.xlu0 %1101
    %1104 = vset.pattern.permute.xlu0 5
    %1105 = vperm.xlu0 %1104, %v163
    %v1106 = vpop.permute.xlu0 %1105
    %1108 = vset.pattern.permute.xlu0 5
    %1109 = vperm.xlu0 %1108, %v165
    %v1110 = vpop.permute.xlu0 %1109
    %1112 = vset.pattern.permute.xlu0 5
    %1113 = vperm.xlu0 %1112, %v167
    %v1114 = vpop.permute.xlu0 %1113
    %1116 = vset.pattern.permute.xlu0 5
    %1117 = vperm.xlu0 %1116, %v169
    %v1118 = vpop.permute.xlu0 %1117
    %1120 = vset.pattern.permute.xlu0 5
    %1121 = vperm.xlu0 %1120, %v171
    %v1122 = vpop.permute.xlu0 %1121
    %1124 = vset.pattern.permute.xlu0 5
    %1125 = vperm.xlu0 %1124, %v173
    %v1126 = vpop.permute.xlu0 %1125
    %1128 = vset.pattern.permute.xlu0 5
    %1129 = vperm.xlu0 %1128, %v175
    %v1130 = vpop.permute.xlu0 %1129
    %1132 = vset.pattern.permute.xlu0 5
    %1133 = vperm.xlu0 %1132, %v177
    %v1134 = vpop.permute.xlu0 %1133
    %1136 = vset.pattern.permute.xlu0 5
    %1137 = vperm.xlu0 %1136, %v179
    %v1138 = vpop.permute.xlu0 %1137
    %1140 = vset.pattern.permute.xlu0 5
    %1141 = vperm.xlu0 %1140, %v181
    %v1142 = vpop.permute.xlu0 %1141
    %v1144 = vsel %vm1064, %v1082, 0.0
    %v1145 = vsel %vm1065, %v1086, 0.0
    %v1146 = vsel %vm1066, %v1090, 0.0
    %v1147 = vsel %vm1067, %v1094, 0.0
    %v1148 = vsel %vm1068, %v1098, 0.0
    %v1149 = vsel %vm1069, %v1102, 0.0
    %v1150 = vsel %vm1070, %v1106, 0.0
    %v1151 = vsel %vm1071, %v1110, 0.0
    %v1152 = vsel %vm1072, %v1114, 0.0
    %v1153 = vsel %vm1073, %v1118, 0.0
    %v1154 = vsel %vm1074, %v1122, 0.0
    %v1155 = vsel %vm1075, %v1126, 0.0
    %v1156 = vsel %vm1076, %v1130, 0.0
    %v1157 = vsel %vm1077, %v1134, 0.0
    %v1158 = vsel %vm1078, %v1138, 0.0
    %v1159 = vsel %vm1079, %v1142, 0.0
    %v1160 = vadd.f32 %v1000, %v1144
    %v1161 = vadd.f32 %v1001, %v1145
    %v1162 = vadd.f32 %v1002, %v1146
    %v1163 = vadd.f32 %v1003, %v1147
    %v1164 = vadd.f32 %v1004, %v1148
    %v1165 = vadd.f32 %v1005, %v1149
    %v1166 = vadd.f32 %v1006, %v1150
    %v1167 = vadd.f32 %v1007, %v1151
    %v1168 = vadd.f32 %v1008, %v1152
    %v1169 = vadd.f32 %v1009, %v1153
    %v1170 = vadd.f32 %v1010, %v1154
    %v1171 = vadd.f32 %v1011, %v1155
    %v1172 = vadd.f32 %v1012, %v1156
    %v1173 = vadd.f32 %v1013, %v1157
    %v1174 = vadd.f32 %v1014, %v1158
    %v1175 = vadd.f32 %v1015, %v1159
    %1176 = vset.pattern.permute.xlu0 6
    %1177 = vperm.xlu0 %1176, %v53
    %v1178 = vpop.permute.xlu0 %1177
    %1179 = vset.pattern.permute.xlu0 6
    %1180 = vperm.xlu0 %1179, %v54
    %v1181 = vpop.permute.xlu0 %1180
    %1182 = vset.pattern.permute.xlu0 6
    %1183 = vperm.xlu0 %1182, %v55
    %v1184 = vpop.permute.xlu0 %1183
    %1185 = vset.pattern.permute.xlu0 6
    %1186 = vperm.xlu0 %1185, %v56
    %v1187 = vpop.permute.xlu0 %1186
    %1188 = vset.pattern.permute.xlu0 6
    %1189 = vperm.xlu0 %1188, %v57
    %v1190 = vpop.permute.xlu0 %1189
    %1191 = vset.pattern.permute.xlu0 6
    %1192 = vperm.xlu0 %1191, %v58
    %v1193 = vpop.permute.xlu0 %1192
    %1194 = vset.pattern.permute.xlu0 6
    %1195 = vperm.xlu0 %1194, %v59
    %v1196 = vpop.permute.xlu0 %1195
    %1197 = vset.pattern.permute.xlu0 6
    %1198 = vperm.xlu0 %1197, %v60
    %v1199 = vpop.permute.xlu0 %1198
    %1200 = vset.pattern.permute.xlu0 6
    %1201 = vperm.xlu0 %1200, %v61
    %v1202 = vpop.permute.xlu0 %1201
    %1203 = vset.pattern.permute.xlu0 6
    %1204 = vperm.xlu0 %1203, %v62
    %v1205 = vpop.permute.xlu0 %1204
    %1206 = vset.pattern.permute.xlu0 6
    %1207 = vperm.xlu0 %1206, %v63
    %v1208 = vpop.permute.xlu0 %1207
    %1209 = vset.pattern.permute.xlu0 6
    %1210 = vperm.xlu0 %1209, %v64
    %v1211 = vpop.permute.xlu0 %1210
    %1212 = vset.pattern.permute.xlu0 6
    %1213 = vperm.xlu0 %1212, %v65
    %v1214 = vpop.permute.xlu0 %1213
    %1215 = vset.pattern.permute.xlu0 6
    %1216 = vperm.xlu0 %1215, %v66
    %v1217 = vpop.permute.xlu0 %1216
    %1218 = vset.pattern.permute.xlu0 6
    %1219 = vperm.xlu0 %1218, %v67
    %v1220 = vpop.permute.xlu0 %1219
    %1221 = vset.pattern.permute.xlu0 6
    %1222 = vperm.xlu0 %1221, %v68
    %v1223 = vpop.permute.xlu0 %1222
    %vm1224 = vcmp.eq.s32.totalorder %v1178, %v183
    %vm1225 = vcmp.eq.s32.totalorder %v1181, %v183
    %vm1226 = vcmp.eq.s32.totalorder %v1184, %v183
    %vm1227 = vcmp.eq.s32.totalorder %v1187, %v183
    %vm1228 = vcmp.eq.s32.totalorder %v1190, %v183
    %vm1229 = vcmp.eq.s32.totalorder %v1193, %v183
    %vm1230 = vcmp.eq.s32.totalorder %v1196, %v183
    %vm1231 = vcmp.eq.s32.totalorder %v1199, %v183
    %vm1232 = vcmp.eq.s32.totalorder %v1202, %v183
    %vm1233 = vcmp.eq.s32.totalorder %v1205, %v183
    %vm1234 = vcmp.eq.s32.totalorder %v1208, %v183
    %vm1235 = vcmp.eq.s32.totalorder %v1211, %v183
    %vm1236 = vcmp.eq.s32.totalorder %v1214, %v183
    %vm1237 = vcmp.eq.s32.totalorder %v1217, %v183
    %vm1238 = vcmp.eq.s32.totalorder %v1220, %v183
    %vm1239 = vcmp.eq.s32.totalorder %v1223, %v183
    %1240 = vset.pattern.permute.xlu0 6
    %1241 = vperm.xlu0 %1240, %v151
    %v1242 = vpop.permute.xlu0 %1241
    %1244 = vset.pattern.permute.xlu0 6
    %1245 = vperm.xlu0 %1244, %v153
    %v1246 = vpop.permute.xlu0 %1245
    %1248 = vset.pattern.permute.xlu0 6
    %1249 = vperm.xlu0 %1248, %v155
    %v1250 = vpop.permute.xlu0 %1249
    %1252 = vset.pattern.permute.xlu0 6
    %1253 = vperm.xlu0 %1252, %v157
    %v1254 = vpop.permute.xlu0 %1253
    %1256 = vset.pattern.permute.xlu0 6
    %1257 = vperm.xlu0 %1256, %v159
    %v1258 = vpop.permute.xlu0 %1257
    %1260 = vset.pattern.permute.xlu0 6
    %1261 = vperm.xlu0 %1260, %v161
    %v1262 = vpop.permute.xlu0 %1261
    %1264 = vset.pattern.permute.xlu0 6
    %1265 = vperm.xlu0 %1264, %v163
    %v1266 = vpop.permute.xlu0 %1265
    %1268 = vset.pattern.permute.xlu0 6
    %1269 = vperm.xlu0 %1268, %v165
    %v1270 = vpop.permute.xlu0 %1269
    %1272 = vset.pattern.permute.xlu0 6
    %1273 = vperm.xlu0 %1272, %v167
    %v1274 = vpop.permute.xlu0 %1273
    %1276 = vset.pattern.permute.xlu0 6
    %1277 = vperm.xlu0 %1276, %v169
    %v1278 = vpop.permute.xlu0 %1277
    %1280 = vset.pattern.permute.xlu0 6
    %1281 = vperm.xlu0 %1280, %v171
    %v1282 = vpop.permute.xlu0 %1281
    %1284 = vset.pattern.permute.xlu0 6
    %1285 = vperm.xlu0 %1284, %v173
    %v1286 = vpop.permute.xlu0 %1285
    %1288 = vset.pattern.permute.xlu0 6
    %1289 = vperm.xlu0 %1288, %v175
    %v1290 = vpop.permute.xlu0 %1289
    %1292 = vset.pattern.permute.xlu0 6
    %1293 = vperm.xlu0 %1292, %v177
    %v1294 = vpop.permute.xlu0 %1293
    %1296 = vset.pattern.permute.xlu0 6
    %1297 = vperm.xlu0 %1296, %v179
    %v1298 = vpop.permute.xlu0 %1297
    %1300 = vset.pattern.permute.xlu0 6
    %1301 = vperm.xlu0 %1300, %v181
    %v1302 = vpop.permute.xlu0 %1301
    %v1304 = vsel %vm1224, %v1242, 0.0
    %v1305 = vsel %vm1225, %v1246, 0.0
    %v1306 = vsel %vm1226, %v1250, 0.0
    %v1307 = vsel %vm1227, %v1254, 0.0
    %v1308 = vsel %vm1228, %v1258, 0.0
    %v1309 = vsel %vm1229, %v1262, 0.0
    %v1310 = vsel %vm1230, %v1266, 0.0
    %v1311 = vsel %vm1231, %v1270, 0.0
    %v1312 = vsel %vm1232, %v1274, 0.0
    %v1313 = vsel %vm1233, %v1278, 0.0
    %v1314 = vsel %vm1234, %v1282, 0.0
    %v1315 = vsel %vm1235, %v1286, 0.0
    %v1316 = vsel %vm1236, %v1290, 0.0
    %v1317 = vsel %vm1237, %v1294, 0.0
    %v1318 = vsel %vm1238, %v1298, 0.0
    %v1319 = vsel %vm1239, %v1302, 0.0
    %v1320 = vadd.f32 %v1160, %v1304
    %v1321 = vadd.f32 %v1161, %v1305
    %v1322 = vadd.f32 %v1162, %v1306
    %v1323 = vadd.f32 %v1163, %v1307
    %v1324 = vadd.f32 %v1164, %v1308
    %v1325 = vadd.f32 %v1165, %v1309
    %v1326 = vadd.f32 %v1166, %v1310
    %v1327 = vadd.f32 %v1167, %v1311
    %v1328 = vadd.f32 %v1168, %v1312
    %v1329 = vadd.f32 %v1169, %v1313
    %v1330 = vadd.f32 %v1170, %v1314
    %v1331 = vadd.f32 %v1171, %v1315
    %v1332 = vadd.f32 %v1172, %v1316
    %v1333 = vadd.f32 %v1173, %v1317
    %v1334 = vadd.f32 %v1174, %v1318
    %v1335 = vadd.f32 %v1175, %v1319
    %1336 = vset.pattern.permute.xlu0 7
    %1337 = vperm.xlu0 %1336, %v53
    %v1338 = vpop.permute.xlu0 %1337
    %1339 = vset.pattern.permute.xlu0 7
    %1340 = vperm.xlu0 %1339, %v54
    %v1341 = vpop.permute.xlu0 %1340
    %1342 = vset.pattern.permute.xlu0 7
    %1343 = vperm.xlu0 %1342, %v55
    %v1344 = vpop.permute.xlu0 %1343
    %1345 = vset.pattern.permute.xlu0 7
    %1346 = vperm.xlu0 %1345, %v56
    %v1347 = vpop.permute.xlu0 %1346
    %1348 = vset.pattern.permute.xlu0 7
    %1349 = vperm.xlu0 %1348, %v57
    %v1350 = vpop.permute.xlu0 %1349
    %1351 = vset.pattern.permute.xlu0 7
    %1352 = vperm.xlu0 %1351, %v58
    %v1353 = vpop.permute.xlu0 %1352
    %1354 = vset.pattern.permute.xlu0 7
    %1355 = vperm.xlu0 %1354, %v59
    %v1356 = vpop.permute.xlu0 %1355
    %1357 = vset.pattern.permute.xlu0 7
    %1358 = vperm.xlu0 %1357, %v60
    %v1359 = vpop.permute.xlu0 %1358
    %1360 = vset.pattern.permute.xlu0 7
    %1361 = vperm.xlu0 %1360, %v61
    %v1362 = vpop.permute.xlu0 %1361
    %1363 = vset.pattern.permute.xlu0 7
    %1364 = vperm.xlu0 %1363, %v62
    %v1365 = vpop.permute.xlu0 %1364
    %1366 = vset.pattern.permute.xlu0 7
    %1367 = vperm.xlu0 %1366, %v63
    %v1368 = vpop.permute.xlu0 %1367
    %1369 = vset.pattern.permute.xlu0 7
    %1370 = vperm.xlu0 %1369, %v64
    %v1371 = vpop.permute.xlu0 %1370
    %1372 = vset.pattern.permute.xlu0 7
    %1373 = vperm.xlu0 %1372, %v65
    %v1374 = vpop.permute.xlu0 %1373
    %1375 = vset.pattern.permute.xlu0 7
    %1376 = vperm.xlu0 %1375, %v66
    %v1377 = vpop.permute.xlu0 %1376
    %1378 = vset.pattern.permute.xlu0 7
    %1379 = vperm.xlu0 %1378, %v67
    %v1380 = vpop.permute.xlu0 %1379
    %1381 = vset.pattern.permute.xlu0 7
    %1382 = vperm.xlu0 %1381, %v68
    %v1383 = vpop.permute.xlu0 %1382
    %vm1384 = vcmp.eq.s32.totalorder %v1338, %v183
    %vm1385 = vcmp.eq.s32.totalorder %v1341, %v183
    %vm1386 = vcmp.eq.s32.totalorder %v1344, %v183
    %vm1387 = vcmp.eq.s32.totalorder %v1347, %v183
    %vm1388 = vcmp.eq.s32.totalorder %v1350, %v183
    %vm1389 = vcmp.eq.s32.totalorder %v1353, %v183
    %vm1390 = vcmp.eq.s32.totalorder %v1356, %v183
    %vm1391 = vcmp.eq.s32.totalorder %v1359, %v183
    %vm1392 = vcmp.eq.s32.totalorder %v1362, %v183
    %vm1393 = vcmp.eq.s32.totalorder %v1365, %v183
    %vm1394 = vcmp.eq.s32.totalorder %v1368, %v183
    %vm1395 = vcmp.eq.s32.totalorder %v1371, %v183
    %vm1396 = vcmp.eq.s32.totalorder %v1374, %v183
    %vm1397 = vcmp.eq.s32.totalorder %v1377, %v183
    %vm1398 = vcmp.eq.s32.totalorder %v1380, %v183
    %vm1399 = vcmp.eq.s32.totalorder %v1383, %v183
    %1400 = vset.pattern.permute.xlu0 7
    %1401 = vperm.xlu0 %1400, %v151
    %v1402 = vpop.permute.xlu0 %1401
    %1404 = vset.pattern.permute.xlu0 7
    %1405 = vperm.xlu0 %1404, %v153
    %v1406 = vpop.permute.xlu0 %1405
    %1408 = vset.pattern.permute.xlu0 7
    %1409 = vperm.xlu0 %1408, %v155
    %v1410 = vpop.permute.xlu0 %1409
    %1412 = vset.pattern.permute.xlu0 7
    %1413 = vperm.xlu0 %1412, %v157
    %v1414 = vpop.permute.xlu0 %1413
    %1416 = vset.pattern.permute.xlu0 7
    %1417 = vperm.xlu0 %1416, %v159
    %v1418 = vpop.permute.xlu0 %1417
    %1420 = vset.pattern.permute.xlu0 7
    %1421 = vperm.xlu0 %1420, %v161
    %v1422 = vpop.permute.xlu0 %1421
    %1424 = vset.pattern.permute.xlu0 7
    %1425 = vperm.xlu0 %1424, %v163
    %v1426 = vpop.permute.xlu0 %1425
    %1428 = vset.pattern.permute.xlu0 7
    %1429 = vperm.xlu0 %1428, %v165
    %v1430 = vpop.permute.xlu0 %1429
    %1432 = vset.pattern.permute.xlu0 7
    %1433 = vperm.xlu0 %1432, %v167
    %v1434 = vpop.permute.xlu0 %1433
    %1436 = vset.pattern.permute.xlu0 7
    %1437 = vperm.xlu0 %1436, %v169
    %v1438 = vpop.permute.xlu0 %1437
    %1440 = vset.pattern.permute.xlu0 7
    %1441 = vperm.xlu0 %1440, %v171
    %v1442 = vpop.permute.xlu0 %1441
    %1444 = vset.pattern.permute.xlu0 7
    %1445 = vperm.xlu0 %1444, %v173
    %v1446 = vpop.permute.xlu0 %1445
    %1448 = vset.pattern.permute.xlu0 7
    %1449 = vperm.xlu0 %1448, %v175
    %v1450 = vpop.permute.xlu0 %1449
    %1452 = vset.pattern.permute.xlu0 7
    %1453 = vperm.xlu0 %1452, %v177
    %v1454 = vpop.permute.xlu0 %1453
    %1456 = vset.pattern.permute.xlu0 7
    %1457 = vperm.xlu0 %1456, %v179
    %v1458 = vpop.permute.xlu0 %1457
    %1460 = vset.pattern.permute.xlu0 7
    %1461 = vperm.xlu0 %1460, %v181
    %v1462 = vpop.permute.xlu0 %1461
    %v1464 = vsel %vm1384, %v1402, 0.0
    %v1465 = vsel %vm1385, %v1406, 0.0
    %v1466 = vsel %vm1386, %v1410, 0.0
    %v1467 = vsel %vm1387, %v1414, 0.0
    %v1468 = vsel %vm1388, %v1418, 0.0
    %v1469 = vsel %vm1389, %v1422, 0.0
    %v1470 = vsel %vm1390, %v1426, 0.0
    %v1471 = vsel %vm1391, %v1430, 0.0
    %v1472 = vsel %vm1392, %v1434, 0.0
    %v1473 = vsel %vm1393, %v1438, 0.0
    %v1474 = vsel %vm1394, %v1442, 0.0
    %v1475 = vsel %vm1395, %v1446, 0.0
    %v1476 = vsel %vm1396, %v1450, 0.0
    %v1477 = vsel %vm1397, %v1454, 0.0
    %v1478 = vsel %vm1398, %v1458, 0.0
    %v1479 = vsel %vm1399, %v1462, 0.0
    %v1480 = vadd.f32 %v1320, %v1464
    %v1481 = vadd.f32 %v1321, %v1465
    %v1482 = vadd.f32 %v1322, %v1466
    %v1483 = vadd.f32 %v1323, %v1467
    %v1484 = vadd.f32 %v1324, %v1468
    %v1485 = vadd.f32 %v1325, %v1469
    %v1486 = vadd.f32 %v1326, %v1470
    %v1487 = vadd.f32 %v1327, %v1471
    %v1488 = vadd.f32 %v1328, %v1472
    %v1489 = vadd.f32 %v1329, %v1473
    %v1490 = vadd.f32 %v1330, %v1474
    %v1491 = vadd.f32 %v1331, %v1475
    %v1492 = vadd.f32 %v1332, %v1476
    %v1493 = vadd.f32 %v1333, %v1477
    %v1494 = vadd.f32 %v1334, %v1478
    %v1495 = vadd.f32 %v1335, %v1479
    %v1496 = vpack.c.bf16 %v1481, %v1480
    %v1497 = vpack.c.bf16 %v1483, %v1482
    %v1498 = vpack.c.bf16 %v1485, %v1484
    %v1499 = vpack.c.bf16 %v1487, %v1486
    %v1500 = vpack.c.bf16 %v1489, %v1488
    %v1501 = vpack.c.bf16 %v1491, %v1490
    %v1502 = vpack.c.bf16 %v1493, %v1492
    %v1503 = vpack.c.bf16 %v1495, %v1494
    %v1504 = vld [vmem:[#allocation2] sm:$0xff]
    %v1505 = vld [vmem:[#allocation2 + $0x8] sm:$0xff]
    %v1506 = vld [vmem:[#allocation2 + $0x10] sm:$0xff]
    %v1507 = vld [vmem:[#allocation2 + $0x18] sm:$0xff]
    %v1508 = vld [vmem:[#allocation2 + $0x20] sm:$0xff]
    %v1509 = vld [vmem:[#allocation2 + $0x28] sm:$0xff]
    %v1510 = vld [vmem:[#allocation2 + $0x30] sm:$0xff]
    %v1511 = vld [vmem:[#allocation2 + $0x38] sm:$0xff]
    %v1512 = vld [vmem:[#allocation2 + $0x40] sm:$0xff]
    %v1513 = vld [vmem:[#allocation2 + $0x48] sm:$0xff]
    %v1514 = vld [vmem:[#allocation2 + $0x50] sm:$0xff]
    %v1515 = vld [vmem:[#allocation2 + $0x58] sm:$0xff]
    %v1516 = vld [vmem:[#allocation2 + $0x60] sm:$0xff]
    %v1517 = vld [vmem:[#allocation2 + $0x68] sm:$0xff]
    %v1518 = vld [vmem:[#allocation2 + $0x70] sm:$0xff]
    %v1519 = vld [vmem:[#allocation2 + $0x78] sm:$0xff]
    %v1520 = vld [vmem:[#allocation2 + $0x80] sm:$0xff]
    %v1521 = vld [vmem:[#allocation2 + $0x88] sm:$0xff]
    %v1522 = vld [vmem:[#allocation2 + $0x90] sm:$0xff]
    %v1523 = vld [vmem:[#allocation2 + $0x98] sm:$0xff]
    %v1524 = vld [vmem:[#allocation2 + $0xa0] sm:$0xff]
    %v1525 = vld [vmem:[#allocation2 + $0xa8] sm:$0xff]
    %v1526 = vld [vmem:[#allocation2 + $0xb0] sm:$0xff]
    %v1527 = vld [vmem:[#allocation2 + $0xb8] sm:$0xff]
    %v1528 = vld [vmem:[#allocation2 + $0xc0] sm:$0xff]
    %v1529 = vld [vmem:[#allocation2 + $0xc8] sm:$0xff]
    %v1530 = vld [vmem:[#allocation2 + $0xd0] sm:$0xff]
    %v1531 = vld [vmem:[#allocation2 + $0xd8] sm:$0xff]
    %v1532 = vld [vmem:[#allocation2 + $0xe0] sm:$0xff]
    %v1533 = vld [vmem:[#allocation2 + $0xe8] sm:$0xff]
    %v1534 = vld [vmem:[#allocation2 + $0xf0] sm:$0xff]
    %v1535 = vld [vmem:[#allocation2 + $0xf8] sm:$0xff]
    %v1536 = vld [vmem:[#allocation2 + $0x100] sm:$0xff]
    %v1537 = vld [vmem:[#allocation2 + $0x108] sm:$0xff]
    %v1538 = vld [vmem:[#allocation2 + $0x110] sm:$0xff]
    %v1539 = vld [vmem:[#allocation2 + $0x118] sm:$0xff]
    %v1540 = vld [vmem:[#allocation2 + $0x120] sm:$0xff]
    %v1541 = vld [vmem:[#allocation2 + $0x128] sm:$0xff]
    %v1542 = vld [vmem:[#allocation2 + $0x130] sm:$0xff]
    %v1543 = vld [vmem:[#allocation2 + $0x138] sm:$0xff]
    %v1544 = vld [vmem:[#allocation2 + $0x140] sm:$0xff]
    %v1545 = vld [vmem:[#allocation2 + $0x148] sm:$0xff]
    %v1546 = vld [vmem:[#allocation2 + $0x150] sm:$0xff]
    %v1547 = vld [vmem:[#allocation2 + $0x158] sm:$0xff]
    %v1548 = vld [vmem:[#allocation2 + $0x160] sm:$0xff]
    %v1549 = vld [vmem:[#allocation2 + $0x168] sm:$0xff]
    %v1550 = vld [vmem:[#allocation2 + $0x170] sm:$0xff]
    %v1551 = vld [vmem:[#allocation2 + $0x178] sm:$0xff]
    %v1552 = vld [vmem:[%s3] sm:$0x3f]
    %v1554 = vlaneseq
    %v1555 = vshrl.u32 %v1554, 7
    %v1556 = vsub.s32 0, %v1555
    %v1557 = vrot.slane %v1552, %v1556
    %v1558 = vlaneseq
    %v1559 = vshrl.u32 %v1558, 7
    %v1560 = vsub.s32 1, %v1559
    %v1561 = vrot.slane %v1552, %v1560
    %v1562 = vlaneseq
    %v1563 = vshrl.u32 %v1562, 7
    %v1564 = vsub.s32 2, %v1563
    %v1565 = vrot.slane %v1552, %v1564
    %v1566 = vlaneseq
    %v1567 = vshrl.u32 %v1566, 7
    %v1568 = vsub.s32 3, %v1567
    %v1569 = vrot.slane %v1552, %v1568
    %v1570 = vlaneseq
    %v1571 = vshrl.u32 %v1570, 7
    %v1572 = vsub.s32 4, %v1571
    %v1573 = vrot.slane %v1552, %v1572
    %v1574 = vlaneseq
    %v1575 = vshrl.u32 %v1574, 7
    %v1576 = vsub.s32 5, %v1575
    %v1577 = vrot.slane %v1552, %v1576
    %v1632 = vunpack.c.l.b16 %v1504
    %v1633 = vunpack.c.h.b16 %v1504
    %v1634 = vunpack.c.l.b16 %v1505
    %v1635 = vunpack.c.h.b16 %v1505
    %v1636 = vunpack.c.l.b16 %v1506
    %v1637 = vunpack.c.h.b16 %v1506
    %v1638 = vunpack.c.l.b16 %v1507
    %v1639 = vunpack.c.h.b16 %v1507
    %v1640 = vunpack.c.l.b16 %v1508
    %v1641 = vunpack.c.h.b16 %v1508
    %v1642 = vunpack.c.l.b16 %v1509
    %v1643 = vunpack.c.h.b16 %v1509
    %v1644 = vunpack.c.l.b16 %v1510
    %v1645 = vunpack.c.h.b16 %v1510
    %v1646 = vunpack.c.l.b16 %v1511
    %v1647 = vunpack.c.h.b16 %v1511
    %v1648 = vunpack.c.l.b16 %v1512
    %v1649 = vunpack.c.h.b16 %v1512
    %v1650 = vunpack.c.l.b16 %v1513
    %v1651 = vunpack.c.h.b16 %v1513
    %v1652 = vunpack.c.l.b16 %v1514
    %v1653 = vunpack.c.h.b16 %v1514
    %v1654 = vunpack.c.l.b16 %v1515
    %v1655 = vunpack.c.h.b16 %v1515
    %v1656 = vunpack.c.l.b16 %v1516
    %v1657 = vunpack.c.h.b16 %v1516
    %v1658 = vunpack.c.l.b16 %v1517
    %v1659 = vunpack.c.h.b16 %v1517
    %v1660 = vunpack.c.l.b16 %v1518
    %v1661 = vunpack.c.h.b16 %v1518
    %v1662 = vunpack.c.l.b16 %v1519
    %v1663 = vunpack.c.h.b16 %v1519
    %v1664 = vunpack.c.l.b16 %v1520
    %v1665 = vunpack.c.h.b16 %v1520
    %v1666 = vunpack.c.l.b16 %v1521
    %v1667 = vunpack.c.h.b16 %v1521
    %v1668 = vunpack.c.l.b16 %v1522
    %v1669 = vunpack.c.h.b16 %v1522
    %v1670 = vunpack.c.l.b16 %v1523
    %v1671 = vunpack.c.h.b16 %v1523
    %v1672 = vunpack.c.l.b16 %v1524
    %v1673 = vunpack.c.h.b16 %v1524
    %v1674 = vunpack.c.l.b16 %v1525
    %v1675 = vunpack.c.h.b16 %v1525
    %v1676 = vunpack.c.l.b16 %v1526
    %v1677 = vunpack.c.h.b16 %v1526
    %v1678 = vunpack.c.l.b16 %v1527
    %v1679 = vunpack.c.h.b16 %v1527
    %v1680 = vunpack.c.l.b16 %v1528
    %v1681 = vunpack.c.h.b16 %v1528
    %v1682 = vunpack.c.l.b16 %v1529
    %v1683 = vunpack.c.h.b16 %v1529
    %v1684 = vunpack.c.l.b16 %v1530
    %v1685 = vunpack.c.h.b16 %v1530
    %v1686 = vunpack.c.l.b16 %v1531
    %v1687 = vunpack.c.h.b16 %v1531
    %v1688 = vunpack.c.l.b16 %v1532
    %v1689 = vunpack.c.h.b16 %v1532
    %v1690 = vunpack.c.l.b16 %v1533
    %v1691 = vunpack.c.h.b16 %v1533
    %v1692 = vunpack.c.l.b16 %v1534
    %v1693 = vunpack.c.h.b16 %v1534
    %v1694 = vunpack.c.l.b16 %v1535
    %v1695 = vunpack.c.h.b16 %v1535
    %v1696 = vunpack.c.l.b16 %v1536
    %v1697 = vunpack.c.h.b16 %v1536
    %v1698 = vunpack.c.l.b16 %v1537
    %v1699 = vunpack.c.h.b16 %v1537
    %v1700 = vunpack.c.l.b16 %v1538
    %v1701 = vunpack.c.h.b16 %v1538
    %v1702 = vunpack.c.l.b16 %v1539
    %v1703 = vunpack.c.h.b16 %v1539
    %v1704 = vunpack.c.l.b16 %v1540
    %v1705 = vunpack.c.h.b16 %v1540
    %v1706 = vunpack.c.l.b16 %v1541
    %v1707 = vunpack.c.h.b16 %v1541
    %v1708 = vunpack.c.l.b16 %v1542
    %v1709 = vunpack.c.h.b16 %v1542
    %v1710 = vunpack.c.l.b16 %v1543
    %v1711 = vunpack.c.h.b16 %v1543
    %v1712 = vunpack.c.l.b16 %v1544
    %v1713 = vunpack.c.h.b16 %v1544
    %v1714 = vunpack.c.l.b16 %v1545
    %v1715 = vunpack.c.h.b16 %v1545
    %v1716 = vunpack.c.l.b16 %v1546
    %v1717 = vunpack.c.h.b16 %v1546
    %v1718 = vunpack.c.l.b16 %v1547
    %v1719 = vunpack.c.h.b16 %v1547
    %v1720 = vunpack.c.l.b16 %v1548
    %v1721 = vunpack.c.h.b16 %v1548
    %v1722 = vunpack.c.l.b16 %v1549
    %v1723 = vunpack.c.h.b16 %v1549
    %v1724 = vunpack.c.l.b16 %v1550
    %v1725 = vunpack.c.h.b16 %v1550
    %v1726 = vunpack.c.l.b16 %v1551
    %v1727 = vunpack.c.h.b16 %v1551
    %v1728 = vpack.c.b16 %v1638, %v1632
    %v1729 = vpack.c.b16 %v1639, %v1633
    %v1730 = vpack.c.b16 %v1640, %v1634
    %v1731 = vpack.c.b16 %v1641, %v1635
    %v1732 = vpack.c.b16 %v1642, %v1636
    %v1733 = vpack.c.b16 %v1643, %v1637
    %v1734 = vpack.c.b16 %v1650, %v1644
    %v1735 = vpack.c.b16 %v1651, %v1645
    %v1736 = vpack.c.b16 %v1652, %v1646
    %v1737 = vpack.c.b16 %v1653, %v1647
    %v1738 = vpack.c.b16 %v1654, %v1648
    %v1739 = vpack.c.b16 %v1655, %v1649
    %v1740 = vpack.c.b16 %v1662, %v1656
    %v1741 = vpack.c.b16 %v1663, %v1657
    %v1742 = vpack.c.b16 %v1664, %v1658
    %v1743 = vpack.c.b16 %v1665, %v1659
    %v1744 = vpack.c.b16 %v1666, %v1660
    %v1745 = vpack.c.b16 %v1667, %v1661
    %v1746 = vpack.c.b16 %v1674, %v1668
    %v1747 = vpack.c.b16 %v1675, %v1669
    %v1748 = vpack.c.b16 %v1676, %v1670
    %v1749 = vpack.c.b16 %v1677, %v1671
    %v1750 = vpack.c.b16 %v1678, %v1672
    %v1751 = vpack.c.b16 %v1679, %v1673
    %v1752 = vpack.c.b16 %v1686, %v1680
    %v1753 = vpack.c.b16 %v1687, %v1681
    %v1754 = vpack.c.b16 %v1688, %v1682
    %v1755 = vpack.c.b16 %v1689, %v1683
    %v1756 = vpack.c.b16 %v1690, %v1684
    %v1757 = vpack.c.b16 %v1691, %v1685
    %v1758 = vpack.c.b16 %v1698, %v1692
    %v1759 = vpack.c.b16 %v1699, %v1693
    %v1760 = vpack.c.b16 %v1700, %v1694
    %v1761 = vpack.c.b16 %v1701, %v1695
    %v1762 = vpack.c.b16 %v1702, %v1696
    %v1763 = vpack.c.b16 %v1703, %v1697
    %v1764 = vpack.c.b16 %v1710, %v1704
    %v1765 = vpack.c.b16 %v1711, %v1705
    %v1766 = vpack.c.b16 %v1712, %v1706
    %v1767 = vpack.c.b16 %v1713, %v1707
    %v1768 = vpack.c.b16 %v1714, %v1708
    %v1769 = vpack.c.b16 %v1715, %v1709
    %v1770 = vpack.c.b16 %v1722, %v1716
    %v1771 = vpack.c.b16 %v1723, %v1717
    %v1772 = vpack.c.b16 %v1724, %v1718
    %v1773 = vpack.c.b16 %v1725, %v1719
    %v1774 = vpack.c.b16 %v1726, %v1720
    %v1775 = vpack.c.b16 %v1727, %v1721
    %1824 = vmatprep.subr.bf16.mxu0 %v1771
    %1825 = vmatpush1.bf16.msra.mxu0 %v1770
    %1826 = vmatprep.subr.bf16.mxu0 %v1765
    %1827 = vmatpush1.bf16.msra.mxu0 %v1764
    %1828 = vmatprep.subr.bf16.mxu0 %v1759
    %1829 = vmatpush1.bf16.msra.mxu0 %v1758
    %1830 = vmatprep.subr.bf16.mxu0 %v1753
    %1831 = vmatpush1.bf16.msra.mxu0 %v1752
    %1832 = vmatprep.subr.bf16.mxu0 %v1747
    %1833 = vmatpush1.bf16.msra.mxu0 %v1746
    %1834 = vmatprep.subr.bf16.mxu0 %v1741
    %1835 = vmatpush1.bf16.msra.mxu0 %v1740
    %1836 = vmatprep.subr.bf16.mxu0 %v1735
    %1837 = vmatpush1.bf16.msra.mxu0 %v1734
    %1838 = vmatprep.subr.bf16.mxu0 %v1729
    %1839 = vmatpush1.bf16.msra.mxu0 %v1728
    %1840 = vmatprep.subr.bf16.mxu0 0
    %1841 = vmatpush2.bf16.msra.mxu0 0
    %1842 = vmatprep.subr.bf16.mxu0 0
    %1843 = vmatpush2.bf16.msra.mxu0 0
    %1844 = vmatprep.subr.bf16.mxu0 0
    %1845 = vmatpush2.bf16.msra.mxu0 0
    %1846 = vmatprep.subr.bf16.mxu0 0
    %1847 = vmatpush2.bf16.msra.mxu0 0
    %1848 = vmatprep.subr.bf16.mxu0 0
    %1849 = vmatpush2.bf16.msra.mxu0 0
    %1850 = vmatprep.subr.bf16.mxu0 0
    %1851 = vmatpush2.bf16.msra.mxu0 0
    %1852 = vmatprep.subr.bf16.mxu0 0
    %1853 = vmatpush2.bf16.msra.mxu0 0
    %1854 = vmatprep.subr.bf16.mxu0 0
    %1855 = vmatpush2.bf16.msra.mxu0 0
    %1856 = vmatprep.mubr.bf16.mxu0 0
    %1857 = vmatmul.mubr.bf16.gmra.mxu0 %v1496
    %v1858 = vpop.f32.mrf.mxu0
    %v1859 = vadd.f32 %v1557, %v1858
    %v1860 = vpop.f32.mrf.mxu0
    %v1861 = vadd.f32 %v1561, %v1860
    %v1862 = vpop.f32.mrf.mxu0
    %v1863 = vadd.f32 %v1557, %v1862
    %v1864 = vpop.f32.mrf.mxu0
    %v1865 = vadd.f32 %v1561, %v1864
    %1866 = vmatprep.mubr.bf16.mxu0 0
    %1867 = vmatmul.mubr.bf16.gmra.mxu0 %v1497
    %v1868 = vpop.f32.mrf.mxu0
    %v1869 = vadd.f32 %v1557, %v1868
    %v1870 = vpop.f32.mrf.mxu0
    %v1871 = vadd.f32 %v1561, %v1870
    %v1872 = vpop.f32.mrf.mxu0
    %v1873 = vadd.f32 %v1557, %v1872
    %v1874 = vpop.f32.mrf.mxu0
    %v1875 = vadd.f32 %v1561, %v1874
    %1876 = vmatprep.mubr.bf16.mxu0 0
    %1877 = vmatmul.mubr.bf16.gmra.mxu0 %v1498
    %v1878 = vpop.f32.mrf.mxu0
    %v1879 = vadd.f32 %v1557, %v1878
    %v1880 = vpop.f32.mrf.mxu0
    %v1881 = vadd.f32 %v1561, %v1880
    %v1882 = vpop.f32.mrf.mxu0
    %v1883 = vadd.f32 %v1557, %v1882
    %v1884 = vpop.f32.mrf.mxu0
    %v1885 = vadd.f32 %v1561, %v1884
    %1886 = vmatprep.mubr.bf16.mxu0 0
    %1887 = vmatmul.mubr.bf16.gmra.mxu0 %v1499
    %v1888 = vpop.f32.mrf.mxu0
    %v1889 = vadd.f32 %v1557, %v1888
    %v1890 = vpop.f32.mrf.mxu0
    %v1891 = vadd.f32 %v1561, %v1890
    %v1892 = vpop.f32.mrf.mxu0
    %v1893 = vadd.f32 %v1557, %v1892
    %v1894 = vpop.f32.mrf.mxu0
    %v1895 = vadd.f32 %v1561, %v1894
    %1896 = vmatprep.mubr.bf16.mxu0 0
    %1897 = vmatmul.mubr.bf16.gmra.mxu0 %v1500
    %v1898 = vpop.f32.mrf.mxu0
    %v1899 = vadd.f32 %v1557, %v1898
    %v1900 = vpop.f32.mrf.mxu0
    %v1901 = vadd.f32 %v1561, %v1900
    %v1902 = vpop.f32.mrf.mxu0
    %v1903 = vadd.f32 %v1557, %v1902
    %v1904 = vpop.f32.mrf.mxu0
    %v1905 = vadd.f32 %v1561, %v1904
    %1906 = vmatprep.mubr.bf16.mxu0 0
    %1907 = vmatmul.mubr.bf16.gmra.mxu0 %v1501
    %v1908 = vpop.f32.mrf.mxu0
    %v1909 = vadd.f32 %v1557, %v1908
    %v1910 = vpop.f32.mrf.mxu0
    %v1911 = vadd.f32 %v1561, %v1910
    %v1912 = vpop.f32.mrf.mxu0
    %v1913 = vadd.f32 %v1557, %v1912
    %v1914 = vpop.f32.mrf.mxu0
    %v1915 = vadd.f32 %v1561, %v1914
    %1916 = vmatprep.mubr.bf16.mxu0 0
    %1917 = vmatmul.mubr.bf16.gmra.mxu0 %v1502
    %v1918 = vpop.f32.mrf.mxu0
    %v1919 = vadd.f32 %v1557, %v1918
    %v1920 = vpop.f32.mrf.mxu0
    %v1921 = vadd.f32 %v1561, %v1920
    %v1922 = vpop.f32.mrf.mxu0
    %v1923 = vadd.f32 %v1557, %v1922
    %v1924 = vpop.f32.mrf.mxu0
    %v1925 = vadd.f32 %v1561, %v1924
    %1926 = vmatprep.mubr.bf16.mxu0 0
    %1927 = vmatmul.mubr.bf16.gmra.mxu0 %v1503
    %v1928 = vpop.f32.mrf.mxu0
    %v1929 = vadd.f32 %v1557, %v1928
    %v1930 = vpop.f32.mrf.mxu0
    %v1931 = vadd.f32 %v1561, %v1930
    %v1932 = vpop.f32.mrf.mxu0
    %v1933 = vadd.f32 %v1557, %v1932
    %v1934 = vpop.f32.mrf.mxu0
    %v1935 = vadd.f32 %v1561, %v1934
    %1936 = vdwg.mxu0
    %1937 = vmatprep.subr.bf16.mxu0 %v1773
    %1938 = vmatpush1.bf16.msra.mxu0 %v1772
    %1939 = vmatprep.subr.bf16.mxu0 %v1767
    %1940 = vmatpush1.bf16.msra.mxu0 %v1766
    %1941 = vmatprep.subr.bf16.mxu0 %v1761
    %1942 = vmatpush1.bf16.msra.mxu0 %v1760
    %1943 = vmatprep.subr.bf16.mxu0 %v1755
    %1944 = vmatpush1.bf16.msra.mxu0 %v1754
    %1945 = vmatprep.subr.bf16.mxu0 %v1749
    %1946 = vmatpush1.bf16.msra.mxu0 %v1748
    %1947 = vmatprep.subr.bf16.mxu0 %v1743
    %1948 = vmatpush1.bf16.msra.mxu0 %v1742
    %1949 = vmatprep.subr.bf16.mxu0 %v1737
    %1950 = vmatpush1.bf16.msra.mxu0 %v1736
    %1951 = vmatprep.subr.bf16.mxu0 %v1731
    %1952 = vmatpush1.bf16.msra.mxu0 %v1730
    %1953 = vmatprep.subr.bf16.mxu0 0
    %1954 = vmatpush2.bf16.msra.mxu0 0
    %1955 = vmatprep.subr.bf16.mxu0 0
    %1956 = vmatpush2.bf16.msra.mxu0 0
    %1957 = vmatprep.subr.bf16.mxu0 0
    %1958 = vmatpush2.bf16.msra.mxu0 0
    %1959 = vmatprep.subr.bf16.mxu0 0
    %1960 = vmatpush2.bf16.msra.mxu0 0
    %1961 = vmatprep.subr.bf16.mxu0 0
    %1962 = vmatpush2.bf16.msra.mxu0 0
    %1963 = vmatprep.subr.bf16.mxu0 0
    %1964 = vmatpush2.bf16.msra.mxu0 0
    %1965 = vmatprep.subr.bf16.mxu0 0
    %1966 = vmatpush2.bf16.msra.mxu0 0
    %1967 = vmatprep.subr.bf16.mxu0 0
    %1968 = vmatpush2.bf16.msra.mxu0 0
    %1969 = vmatprep.mubr.bf16.mxu0 0
    %1970 = vmatmul.mubr.bf16.gmra.mxu0 %v1496
    %v1971 = vpop.f32.mrf.mxu0
    %v1972 = vadd.f32 %v1565, %v1971
    %v1973 = vpop.f32.mrf.mxu0
    %v1974 = vadd.f32 %v1569, %v1973
    %v1975 = vpop.f32.mrf.mxu0
    %v1976 = vadd.f32 %v1565, %v1975
    %v1977 = vpop.f32.mrf.mxu0
    %v1978 = vadd.f32 %v1569, %v1977
    %1979 = vmatprep.mubr.bf16.mxu0 0
    %1980 = vmatmul.mubr.bf16.gmra.mxu0 %v1497
    %v1981 = vpop.f32.mrf.mxu0
    %v1982 = vadd.f32 %v1565, %v1981
    %v1983 = vpop.f32.mrf.mxu0
    %v1984 = vadd.f32 %v1569, %v1983
    %v1985 = vpop.f32.mrf.mxu0
    %v1986 = vadd.f32 %v1565, %v1985
    %v1987 = vpop.f32.mrf.mxu0
    %v1988 = vadd.f32 %v1569, %v1987
    %1989 = vmatprep.mubr.bf16.mxu0 0
    %1990 = vmatmul.mubr.bf16.gmra.mxu0 %v1498
    %v1991 = vpop.f32.mrf.mxu0
    %v1992 = vadd.f32 %v1565, %v1991
    %v1993 = vpop.f32.mrf.mxu0
    %v1994 = vadd.f32 %v1569, %v1993
    %v1995 = vpop.f32.mrf.mxu0
    %v1996 = vadd.f32 %v1565, %v1995
    %v1997 = vpop.f32.mrf.mxu0
    %v1998 = vadd.f32 %v1569, %v1997
    %1999 = vmatprep.mubr.bf16.mxu0 0
    %2000 = vmatmul.mubr.bf16.gmra.mxu0 %v1499
    %v2001 = vpop.f32.mrf.mxu0
    %v2002 = vadd.f32 %v1565, %v2001
    %v2003 = vpop.f32.mrf.mxu0
    %v2004 = vadd.f32 %v1569, %v2003
    %v2005 = vpop.f32.mrf.mxu0
    %v2006 = vadd.f32 %v1565, %v2005
    %v2007 = vpop.f32.mrf.mxu0
    %v2008 = vadd.f32 %v1569, %v2007
    %2009 = vmatprep.mubr.bf16.mxu0 0
    %2010 = vmatmul.mubr.bf16.gmra.mxu0 %v1500
    %v2011 = vpop.f32.mrf.mxu0
    %v2012 = vadd.f32 %v1565, %v2011
    %v2013 = vpop.f32.mrf.mxu0
    %v2014 = vadd.f32 %v1569, %v2013
    %v2015 = vpop.f32.mrf.mxu0
    %v2016 = vadd.f32 %v1565, %v2015
    %v2017 = vpop.f32.mrf.mxu0
    %v2018 = vadd.f32 %v1569, %v2017
    %2019 = vmatprep.mubr.bf16.mxu0 0
    %2020 = vmatmul.mubr.bf16.gmra.mxu0 %v1501
    %v2021 = vpop.f32.mrf.mxu0
    %v2022 = vadd.f32 %v1565, %v2021
    %v2023 = vpop.f32.mrf.mxu0
    %v2024 = vadd.f32 %v1569, %v2023
    %v2025 = vpop.f32.mrf.mxu0
    %v2026 = vadd.f32 %v1565, %v2025
    %v2027 = vpop.f32.mrf.mxu0
    %v2028 = vadd.f32 %v1569, %v2027
    %2029 = vmatprep.mubr.bf16.mxu0 0
    %2030 = vmatmul.mubr.bf16.gmra.mxu0 %v1502
    %v2031 = vpop.f32.mrf.mxu0
    %v2032 = vadd.f32 %v1565, %v2031
    %v2033 = vpop.f32.mrf.mxu0
    %v2034 = vadd.f32 %v1569, %v2033
    %v2035 = vpop.f32.mrf.mxu0
    %v2036 = vadd.f32 %v1565, %v2035
    %v2037 = vpop.f32.mrf.mxu0
    %v2038 = vadd.f32 %v1569, %v2037
    %2039 = vmatprep.mubr.bf16.mxu0 0
    %2040 = vmatmul.mubr.bf16.gmra.mxu0 %v1503
    %v2041 = vpop.f32.mrf.mxu0
    %v2042 = vadd.f32 %v1565, %v2041
    %v2043 = vpop.f32.mrf.mxu0
    %v2044 = vadd.f32 %v1569, %v2043
    %v2045 = vpop.f32.mrf.mxu0
    %v2046 = vadd.f32 %v1565, %v2045
    %v2047 = vpop.f32.mrf.mxu0
    %v2048 = vadd.f32 %v1569, %v2047
    %2049 = vdwg.mxu0
    %2050 = vmatprep.subr.bf16.mxu0 %v1775
    %2051 = vmatpush1.bf16.msra.mxu0 %v1774
    %2052 = vmatprep.subr.bf16.mxu0 %v1769
    %2053 = vmatpush1.bf16.msra.mxu0 %v1768
    %2054 = vmatprep.subr.bf16.mxu0 %v1763
    %2055 = vmatpush1.bf16.msra.mxu0 %v1762
    %2056 = vmatprep.subr.bf16.mxu0 %v1757
    %2057 = vmatpush1.bf16.msra.mxu0 %v1756
    %2058 = vmatprep.subr.bf16.mxu0 %v1751
    %2059 = vmatpush1.bf16.msra.mxu0 %v1750
    %2060 = vmatprep.subr.bf16.mxu0 %v1745
    %2061 = vmatpush1.bf16.msra.mxu0 %v1744
    %2062 = vmatprep.subr.bf16.mxu0 %v1739
    %2063 = vmatpush1.bf16.msra.mxu0 %v1738
    %2064 = vmatprep.subr.bf16.mxu0 %v1733
    %2065 = vmatpush1.bf16.msra.mxu0 %v1732
    %2066 = vmatprep.subr.bf16.mxu0 0
    %2067 = vmatpush2.bf16.msra.mxu0 0
    %2068 = vmatprep.subr.bf16.mxu0 0
    %2069 = vmatpush2.bf16.msra.mxu0 0
    %2070 = vmatprep.subr.bf16.mxu0 0
    %2071 = vmatpush2.bf16.msra.mxu0 0
    %2072 = vmatprep.subr.bf16.mxu0 0
    %2073 = vmatpush2.bf16.msra.mxu0 0
    %2074 = vmatprep.subr.bf16.mxu0 0
    %2075 = vmatpush2.bf16.msra.mxu0 0
    %2076 = vmatprep.subr.bf16.mxu0 0
    %2077 = vmatpush2.bf16.msra.mxu0 0
    %2078 = vmatprep.subr.bf16.mxu0 0
    %2079 = vmatpush2.bf16.msra.mxu0 0
    %2080 = vmatprep.subr.bf16.mxu0 0
    %2081 = vmatpush2.bf16.msra.mxu0 0
    %2082 = vmatprep.mubr.bf16.mxu0 0
    %2083 = vmatmul.mubr.bf16.gmra.mxu0 %v1496
    %v2084 = vpop.f32.mrf.mxu0
    %v2085 = vadd.f32 %v1573, %v2084
    %v2086 = vpop.f32.mrf.mxu0
    %v2087 = vadd.f32 %v1577, %v2086
    %v2088 = vpop.f32.mrf.mxu0
    %v2089 = vadd.f32 %v1573, %v2088
    %v2090 = vpop.f32.mrf.mxu0
    %v2091 = vadd.f32 %v1577, %v2090
    %2092 = vmatprep.mubr.bf16.mxu0 0
    %2093 = vmatmul.mubr.bf16.gmra.mxu0 %v1497
    %v2094 = vpop.f32.mrf.mxu0
    %v2095 = vadd.f32 %v1573, %v2094
    %v2096 = vpop.f32.mrf.mxu0
    %v2097 = vadd.f32 %v1577, %v2096
    %v2098 = vpop.f32.mrf.mxu0
    %v2099 = vadd.f32 %v1573, %v2098
    %v2100 = vpop.f32.mrf.mxu0
    %v2101 = vadd.f32 %v1577, %v2100
    %2102 = vmatprep.mubr.bf16.mxu0 0
    %2103 = vmatmul.mubr.bf16.gmra.mxu0 %v1498
    %v2104 = vpop.f32.mrf.mxu0
    %v2105 = vadd.f32 %v1573, %v2104
    %v2106 = vpop.f32.mrf.mxu0
    %v2107 = vadd.f32 %v1577, %v2106
    %v2108 = vpop.f32.mrf.mxu0
    %v2109 = vadd.f32 %v1573, %v2108
    %v2110 = vpop.f32.mrf.mxu0
    %v2111 = vadd.f32 %v1577, %v2110
    %2112 = vmatprep.mubr.bf16.mxu0 0
    %2113 = vmatmul.mubr.bf16.gmra.mxu0 %v1499
    %v2114 = vpop.f32.mrf.mxu0
    %v2115 = vadd.f32 %v1573, %v2114
    %v2116 = vpop.f32.mrf.mxu0
    %v2117 = vadd.f32 %v1577, %v2116
    %v2118 = vpop.f32.mrf.mxu0
    %v2119 = vadd.f32 %v1573, %v2118
    %v2120 = vpop.f32.mrf.mxu0
    %v2121 = vadd.f32 %v1577, %v2120
    %2122 = vmatprep.mubr.bf16.mxu0 0
    %2123 = vmatmul.mubr.bf16.gmra.mxu0 %v1500
    %v2124 = vpop.f32.mrf.mxu0
    %v2125 = vadd.f32 %v1573, %v2124
    %v2126 = vpop.f32.mrf.mxu0
    %v2127 = vadd.f32 %v1577, %v2126
    %v2128 = vpop.f32.mrf.mxu0
    %v2129 = vadd.f32 %v1573, %v2128
    %v2130 = vpop.f32.mrf.mxu0
    %v2131 = vadd.f32 %v1577, %v2130
    %2132 = vmatprep.mubr.bf16.mxu0 0
    %2133 = vmatmul.mubr.bf16.gmra.mxu0 %v1501
    %v2134 = vpop.f32.mrf.mxu0
    %v2135 = vadd.f32 %v1573, %v2134
    %v2136 = vpop.f32.mrf.mxu0
    %v2137 = vadd.f32 %v1577, %v2136
    %v2138 = vpop.f32.mrf.mxu0
    %v2139 = vadd.f32 %v1573, %v2138
    %v2140 = vpop.f32.mrf.mxu0
    %v2141 = vadd.f32 %v1577, %v2140
    %2142 = vmatprep.mubr.bf16.mxu0 0
    %2143 = vmatmul.mubr.bf16.gmra.mxu0 %v1502
    %v2144 = vpop.f32.mrf.mxu0
    %v2145 = vadd.f32 %v1573, %v2144
    %v2146 = vpop.f32.mrf.mxu0
    %v2147 = vadd.f32 %v1577, %v2146
    %v2148 = vpop.f32.mrf.mxu0
    %v2149 = vadd.f32 %v1573, %v2148
    %v2150 = vpop.f32.mrf.mxu0
    %v2151 = vadd.f32 %v1577, %v2150
    %2152 = vmatprep.mubr.bf16.mxu0 0
    %2153 = vmatmul.mubr.bf16.gmra.mxu0 %v1503
    %v2154 = vpop.f32.mrf.mxu0
    %v2155 = vadd.f32 %v1573, %v2154
    %v2156 = vpop.f32.mrf.mxu0
    %v2157 = vadd.f32 %v1577, %v2156
    %v2158 = vpop.f32.mrf.mxu0
    %v2159 = vadd.f32 %v1573, %v2158
    %v2160 = vpop.f32.mrf.mxu0
    %v2161 = vadd.f32 %v1577, %v2160
    %2162 = vdwg.mxu0
    %v2163 = vtanh.pop %v1859
    %v2164 = vtanh.pop %v1861
    %v2165 = vtanh.pop %v1972
    %v2166 = vtanh.pop %v1974
    %v2167 = vtanh.pop %v2085
    %v2168 = vtanh.pop %v2087
    %v2169 = vtanh.pop %v1863
    %v2170 = vtanh.pop %v1865
    %v2171 = vtanh.pop %v1976
    %v2172 = vtanh.pop %v1978
    %v2173 = vtanh.pop %v2089
    %v2174 = vtanh.pop %v2091
    %v2175 = vtanh.pop %v1869
    %v2176 = vtanh.pop %v1871
    %v2177 = vtanh.pop %v1982
    %v2178 = vtanh.pop %v1984
    %v2179 = vtanh.pop %v2095
    %v2180 = vtanh.pop %v2097
    %v2181 = vtanh.pop %v1873
    %v2182 = vtanh.pop %v1875
    %v2183 = vtanh.pop %v1986
    %v2184 = vtanh.pop %v1988
    %v2185 = vtanh.pop %v2099
    %v2186 = vtanh.pop %v2101
    %v2187 = vtanh.pop %v1879
    %v2188 = vtanh.pop %v1881
    %v2189 = vtanh.pop %v1992
    %v2190 = vtanh.pop %v1994
    %v2191 = vtanh.pop %v2105
    %v2192 = vtanh.pop %v2107
    %v2193 = vtanh.pop %v1883
    %v2194 = vtanh.pop %v1885
    %v2195 = vtanh.pop %v1996
    %v2196 = vtanh.pop %v1998
    %v2197 = vtanh.pop %v2109
    %v2198 = vtanh.pop %v2111
    %v2199 = vtanh.pop %v1889
    %v2200 = vtanh.pop %v1891
    %v2201 = vtanh.pop %v2002
    %v2202 = vtanh.pop %v2004
    %v2203 = vtanh.pop %v2115
    %v2204 = vtanh.pop %v2117
    %v2205 = vtanh.pop %v1893
    %v2206 = vtanh.pop %v1895
    %v2207 = vtanh.pop %v2006
    %v2208 = vtanh.pop %v2008
    %v2209 = vtanh.pop %v2119
    %v2210 = vtanh.pop %v2121
    %v2211 = vtanh.pop %v1899
    %v2212 = vtanh.pop %v1901
    %v2213 = vtanh.pop %v2012
    %v2214 = vtanh.pop %v2014
    %v2215 = vtanh.pop %v2125
    %v2216 = vtanh.pop %v2127
    %v2217 = vtanh.pop %v1903
    %v2218 = vtanh.pop %v1905
    %v2219 = vtanh.pop %v2016
    %v2220 = vtanh.pop %v2018
    %v2221 = vtanh.pop %v2129
    %v2222 = vtanh.pop %v2131
    %v2223 = vtanh.pop %v1909
    %v2224 = vtanh.pop %v1911
    %v2225 = vtanh.pop %v2022
    %v2226 = vtanh.pop %v2024
    %v2227 = vtanh.pop %v2135
    %v2228 = vtanh.pop %v2137
    %v2229 = vtanh.pop %v1913
    %v2230 = vtanh.pop %v1915
    %v2231 = vtanh.pop %v2026
    %v2232 = vtanh.pop %v2028
    %v2233 = vtanh.pop %v2139
    %v2234 = vtanh.pop %v2141
    %v2235 = vtanh.pop %v1919
    %v2236 = vtanh.pop %v1921
    %v2237 = vtanh.pop %v2032
    %v2238 = vtanh.pop %v2034
    %v2239 = vtanh.pop %v2145
    %v2240 = vtanh.pop %v2147
    %v2241 = vtanh.pop %v1923
    %v2242 = vtanh.pop %v1925
    %v2243 = vtanh.pop %v2036
    %v2244 = vtanh.pop %v2038
    %v2245 = vtanh.pop %v2149
    %v2246 = vtanh.pop %v2151
    %v2247 = vtanh.pop %v1929
    %v2248 = vtanh.pop %v1931
    %v2249 = vtanh.pop %v2042
    %v2250 = vtanh.pop %v2044
    %v2251 = vtanh.pop %v2155
    %v2252 = vtanh.pop %v2157
    %v2253 = vtanh.pop %v1933
    %v2254 = vtanh.pop %v1935
    %v2255 = vtanh.pop %v2046
    %v2256 = vtanh.pop %v2048
    %v2257 = vtanh.pop %v2159
    %v2258 = vtanh.pop %v2161
    %v2259 = vpack.c.bf16 %v2169, %v2163
    %v2260 = vpack.c.bf16 %v2170, %v2164
    %v2261 = vpack.c.bf16 %v2171, %v2165
    %v2262 = vpack.c.bf16 %v2172, %v2166
    %v2263 = vpack.c.bf16 %v2173, %v2167
    %v2264 = vpack.c.bf16 %v2174, %v2168
    %v2265 = vpack.c.bf16 %v2181, %v2175
    %v2266 = vpack.c.bf16 %v2182, %v2176
    %v2267 = vpack.c.bf16 %v2183, %v2177
    %v2268 = vpack.c.bf16 %v2184, %v2178
    %v2269 = vpack.c.bf16 %v2185, %v2179
    %v2270 = vpack.c.bf16 %v2186, %v2180
    %v2271 = vpack.c.bf16 %v2193, %v2187
    %v2272 = vpack.c.bf16 %v2194, %v2188
    %v2273 = vpack.c.bf16 %v2195, %v2189
    %v2274 = vpack.c.bf16 %v2196, %v2190
    %v2275 = vpack.c.bf16 %v2197, %v2191
    %v2276 = vpack.c.bf16 %v2198, %v2192
    %v2277 = vpack.c.bf16 %v2205, %v2199
    %v2278 = vpack.c.bf16 %v2206, %v2200
    %v2279 = vpack.c.bf16 %v2207, %v2201
    %v2280 = vpack.c.bf16 %v2208, %v2202
    %v2281 = vpack.c.bf16 %v2209, %v2203
    %v2282 = vpack.c.bf16 %v2210, %v2204
    %v2283 = vpack.c.bf16 %v2217, %v2211
    %v2284 = vpack.c.bf16 %v2218, %v2212
    %v2285 = vpack.c.bf16 %v2219, %v2213
    %v2286 = vpack.c.bf16 %v2220, %v2214
    %v2287 = vpack.c.bf16 %v2221, %v2215
    %v2288 = vpack.c.bf16 %v2222, %v2216
    %v2289 = vpack.c.bf16 %v2229, %v2223
    %v2290 = vpack.c.bf16 %v2230, %v2224
    %v2291 = vpack.c.bf16 %v2231, %v2225
    %v2292 = vpack.c.bf16 %v2232, %v2226
    %v2293 = vpack.c.bf16 %v2233, %v2227
    %v2294 = vpack.c.bf16 %v2234, %v2228
    %v2295 = vpack.c.bf16 %v2241, %v2235
    %v2296 = vpack.c.bf16 %v2242, %v2236
    %v2297 = vpack.c.bf16 %v2243, %v2237
    %v2298 = vpack.c.bf16 %v2244, %v2238
    %v2299 = vpack.c.bf16 %v2245, %v2239
    %v2300 = vpack.c.bf16 %v2246, %v2240
    %v2301 = vpack.c.bf16 %v2253, %v2247
    %v2302 = vpack.c.bf16 %v2254, %v2248
    %v2303 = vpack.c.bf16 %v2255, %v2249
    %v2304 = vpack.c.bf16 %v2256, %v2250
    %v2305 = vpack.c.bf16 %v2257, %v2251
    %v2306 = vpack.c.bf16 %v2258, %v2252
    %v2307 = vld [vmem:[#allocation5] sm:$0xf]
    %v2308 = vld [vmem:[#allocation5 + $0x4] sm:$0xf]
    %v2309 = vld [vmem:[#allocation5 + $0x8] sm:$0xf]
    %v2310 = vld [vmem:[#allocation5 + $0xc] sm:$0xf]
    %v2311 = vld [vmem:[#allocation5 + $0x10] sm:$0xf]
    %v2312 = vld [vmem:[#allocation5 + $0x14] sm:$0xf]
    %v2313 = vld [vmem:[#allocation5 + $0x18] sm:$0xf]
    %v2314 = vld [vmem:[#allocation5 + $0x1c] sm:$0xf]
    %v2315 = vld [vmem:[#allocation5 + $0x20] sm:$0xf]
    %v2316 = vld [vmem:[#allocation5 + $0x24] sm:$0xf]
    %v2317 = vld [vmem:[#allocation5 + $0x28] sm:$0xf]
    %v2318 = vld [vmem:[#allocation5 + $0x2c] sm:$0xf]
    %v2319 = vld [vmem:[#allocation5 + $0x30] sm:$0xf]
    %v2320 = vld [vmem:[#allocation5 + $0x34] sm:$0xf]
    %v2321 = vld [vmem:[#allocation5 + $0x38] sm:$0xf]
    %v2322 = vld [vmem:[#allocation5 + $0x3c] sm:$0xf]
    %v2323 = vld [vmem:[#allocation5 + $0x40] sm:$0xf]
    %v2324 = vld [vmem:[#allocation5 + $0x44] sm:$0xf]
    %v2325 = vld [vmem:[#allocation5 + $0x48] sm:$0xf]
    %v2326 = vld [vmem:[#allocation5 + $0x4c] sm:$0xf]
    %v2327 = vld [vmem:[#allocation5 + $0x50] sm:$0xf]
    %v2328 = vld [vmem:[#allocation5 + $0x54] sm:$0xf]
    %v2329 = vld [vmem:[#allocation5 + $0x58] sm:$0xf]
    %v2330 = vld [vmem:[#allocation5 + $0x5c] sm:$0xf]
    %v2331 = vld [vmem:[#allocation5 + $0x60] sm:$0xf]
    %v2332 = vld [vmem:[#allocation5 + $0x64] sm:$0xf]
    %v2333 = vld [vmem:[#allocation5 + $0x68] sm:$0xf]
    %v2334 = vld [vmem:[#allocation5 + $0x6c] sm:$0xf]
    %v2335 = vld [vmem:[#allocation5 + $0x70] sm:$0xf]
    %v2336 = vld [vmem:[#allocation5 + $0x74] sm:$0xf]
    %v2337 = vld [vmem:[#allocation5 + $0x78] sm:$0xf]
    %v2338 = vld [vmem:[#allocation5 + $0x7c] sm:$0xf]
    %v2339 = vld [vmem:[#allocation5 + $0x80] sm:$0xf]
    %v2340 = vld [vmem:[#allocation5 + $0x84] sm:$0xf]
    %v2341 = vld [vmem:[#allocation5 + $0x88] sm:$0xf]
    %v2342 = vld [vmem:[#allocation5 + $0x8c] sm:$0xf]
    %v2343 = vld [vmem:[#allocation5 + $0x90] sm:$0xf]
    %v2344 = vld [vmem:[#allocation5 + $0x94] sm:$0xf]
    %v2345 = vld [vmem:[#allocation5 + $0x98] sm:$0xf]
    %v2346 = vld [vmem:[#allocation5 + $0x9c] sm:$0xf]
    %v2347 = vld [vmem:[#allocation5 + $0xa0] sm:$0xf]
    %v2348 = vld [vmem:[#allocation5 + $0xa4] sm:$0xf]
    %v2349 = vld [vmem:[#allocation5 + $0xa8] sm:$0xf]
    %v2350 = vld [vmem:[#allocation5 + $0xac] sm:$0xf]
    %v2351 = vld [vmem:[#allocation5 + $0xb0] sm:$0xf]
    %v2352 = vld [vmem:[#allocation5 + $0xb4] sm:$0xf]
    %v2353 = vld [vmem:[#allocation5 + $0xb8] sm:$0xf]
    %v2354 = vld [vmem:[#allocation5 + $0xbc] sm:$0xf]
    %v2355 = vld [vmem:[#allocation5 + $0xc0] sm:$0xf]
    %v2356 = vld [vmem:[#allocation5 + $0xc4] sm:$0xf]
    %v2357 = vld [vmem:[#allocation5 + $0xc8] sm:$0xf]
    %v2358 = vld [vmem:[#allocation5 + $0xcc] sm:$0xf]
    %v2359 = vld [vmem:[#allocation5 + $0xd0] sm:$0xf]
    %v2360 = vld [vmem:[#allocation5 + $0xd4] sm:$0xf]
    %v2361 = vld [vmem:[#allocation5 + $0xd8] sm:$0xf]
    %v2362 = vld [vmem:[#allocation5 + $0xdc] sm:$0xf]
    %v2363 = vld [vmem:[#allocation5 + $0xe0] sm:$0xf]
    %v2364 = vld [vmem:[#allocation5 + $0xe4] sm:$0xf]
    %v2365 = vld [vmem:[#allocation5 + $0xe8] sm:$0xf]
    %v2366 = vld [vmem:[#allocation5 + $0xec] sm:$0xf]
    %v2367 = vld [vmem:[#allocation5 + $0xf0] sm:$0xf]
    %v2368 = vld [vmem:[#allocation5 + $0xf4] sm:$0xf]
    %v2369 = vld [vmem:[#allocation5 + $0xf8] sm:$0xf]
    %v2370 = vld [vmem:[#allocation5 + $0xfc] sm:$0xf]
    %v2371 = vld [vmem:[#allocation5 + $0x100] sm:$0xf]
    %v2372 = vld [vmem:[#allocation5 + $0x104] sm:$0xf]
    %v2373 = vld [vmem:[#allocation5 + $0x108] sm:$0xf]
    %v2374 = vld [vmem:[#allocation5 + $0x10c] sm:$0xf]
    %v2375 = vld [vmem:[#allocation5 + $0x110] sm:$0xf]
    %v2376 = vld [vmem:[#allocation5 + $0x114] sm:$0xf]
    %v2377 = vld [vmem:[#allocation5 + $0x118] sm:$0xf]
    %v2378 = vld [vmem:[#allocation5 + $0x11c] sm:$0xf]
    %v2379 = vld [vmem:[#allocation5 + $0x120] sm:$0xf]
    %v2380 = vld [vmem:[#allocation5 + $0x124] sm:$0xf]
    %v2381 = vld [vmem:[#allocation5 + $0x128] sm:$0xf]
    %v2382 = vld [vmem:[#allocation5 + $0x12c] sm:$0xf]
    %v2383 = vld [vmem:[#allocation5 + $0x130] sm:$0xf]
    %v2384 = vld [vmem:[#allocation5 + $0x134] sm:$0xf]
    %v2385 = vld [vmem:[#allocation5 + $0x138] sm:$0xf]
    %v2386 = vld [vmem:[#allocation5 + $0x13c] sm:$0xf]
    %v2387 = vld [vmem:[#allocation5 + $0x140] sm:$0xf]
    %v2388 = vld [vmem:[#allocation5 + $0x144] sm:$0xf]
    %v2389 = vld [vmem:[#allocation5 + $0x148] sm:$0xf]
    %v2390 = vld [vmem:[#allocation5 + $0x14c] sm:$0xf]
    %v2391 = vld [vmem:[#allocation5 + $0x150] sm:$0xf]
    %v2392 = vld [vmem:[#allocation5 + $0x154] sm:$0xf]
    %v2393 = vld [vmem:[#allocation5 + $0x158] sm:$0xf]
    %v2394 = vld [vmem:[#allocation5 + $0x15c] sm:$0xf]
    %v2395 = vld [vmem:[#allocation5 + $0x160] sm:$0xf]
    %v2396 = vld [vmem:[#allocation5 + $0x164] sm:$0xf]
    %v2397 = vld [vmem:[#allocation5 + $0x168] sm:$0xf]
    %v2398 = vld [vmem:[#allocation5 + $0x16c] sm:$0xf]
    %v2399 = vld [vmem:[#allocation5 + $0x170] sm:$0xf]
    %v2400 = vld [vmem:[#allocation5 + $0x174] sm:$0xf]
    %v2401 = vld [vmem:[#allocation5 + $0x178] sm:$0xf]
    %v2402 = vld [vmem:[#allocation5 + $0x17c] sm:$0xf]
    %v2403 = vld [vmem:[%s5] sm:$0x1]
    %v2405 = vlaneseq
    %v2406 = vshrl.u32 %v2405, 7
    %v2407 = vsub.s32 0, %v2406
    %v2408 = vrot.slane %v2403, %v2407
    %v2506 = vunpack.c.l.b16 %v2307
    %v2507 = vunpack.c.l.b16 %v2308
    %v2508 = vunpack.c.l.b16 %v2309
    %v2509 = vunpack.c.l.b16 %v2310
    %v2510 = vunpack.c.l.b16 %v2311
    %v2511 = vunpack.c.l.b16 %v2312
    %v2512 = vunpack.c.l.b16 %v2313
    %v2513 = vunpack.c.l.b16 %v2314
    %v2514 = vunpack.c.l.b16 %v2315
    %v2515 = vunpack.c.l.b16 %v2316
    %v2516 = vunpack.c.l.b16 %v2317
    %v2517 = vunpack.c.l.b16 %v2318
    %v2518 = vunpack.c.l.b16 %v2319
    %v2519 = vunpack.c.l.b16 %v2320
    %v2520 = vunpack.c.l.b16 %v2321
    %v2521 = vunpack.c.l.b16 %v2322
    %v2522 = vunpack.c.l.b16 %v2323
    %v2523 = vunpack.c.l.b16 %v2324
    %v2524 = vunpack.c.l.b16 %v2325
    %v2525 = vunpack.c.l.b16 %v2326
    %v2526 = vunpack.c.l.b16 %v2327
    %v2527 = vunpack.c.l.b16 %v2328
    %v2528 = vunpack.c.l.b16 %v2329
    %v2529 = vunpack.c.l.b16 %v2330
    %v2530 = vunpack.c.l.b16 %v2331
    %v2531 = vunpack.c.l.b16 %v2332
    %v2532 = vunpack.c.l.b16 %v2333
    %v2533 = vunpack.c.l.b16 %v2334
    %v2534 = vunpack.c.l.b16 %v2335
    %v2535 = vunpack.c.l.b16 %v2336
    %v2536 = vunpack.c.l.b16 %v2337
    %v2537 = vunpack.c.l.b16 %v2338
    %v2538 = vunpack.c.l.b16 %v2339
    %v2539 = vunpack.c.l.b16 %v2340
    %v2540 = vunpack.c.l.b16 %v2341
    %v2541 = vunpack.c.l.b16 %v2342
    %v2542 = vunpack.c.l.b16 %v2343
    %v2543 = vunpack.c.l.b16 %v2344
    %v2544 = vunpack.c.l.b16 %v2345
    %v2545 = vunpack.c.l.b16 %v2346
    %v2546 = vunpack.c.l.b16 %v2347
    %v2547 = vunpack.c.l.b16 %v2348
    %v2548 = vunpack.c.l.b16 %v2349
    %v2549 = vunpack.c.l.b16 %v2350
    %v2550 = vunpack.c.l.b16 %v2351
    %v2551 = vunpack.c.l.b16 %v2352
    %v2552 = vunpack.c.l.b16 %v2353
    %v2553 = vunpack.c.l.b16 %v2354
    %v2554 = vunpack.c.l.b16 %v2355
    %v2555 = vunpack.c.l.b16 %v2356
    %v2556 = vunpack.c.l.b16 %v2357
    %v2557 = vunpack.c.l.b16 %v2358
    %v2558 = vunpack.c.l.b16 %v2359
    %v2559 = vunpack.c.l.b16 %v2360
    %v2560 = vunpack.c.l.b16 %v2361
    %v2561 = vunpack.c.l.b16 %v2362
    %v2562 = vunpack.c.l.b16 %v2363
    %v2563 = vunpack.c.l.b16 %v2364
    %v2564 = vunpack.c.l.b16 %v2365
    %v2565 = vunpack.c.l.b16 %v2366
    %v2566 = vunpack.c.l.b16 %v2367
    %v2567 = vunpack.c.l.b16 %v2368
    %v2568 = vunpack.c.l.b16 %v2369
    %v2569 = vunpack.c.l.b16 %v2370
    %v2570 = vunpack.c.l.b16 %v2371
    %v2571 = vunpack.c.l.b16 %v2372
    %v2572 = vunpack.c.l.b16 %v2373
    %v2573 = vunpack.c.l.b16 %v2374
    %v2574 = vunpack.c.l.b16 %v2375
    %v2575 = vunpack.c.l.b16 %v2376
    %v2576 = vunpack.c.l.b16 %v2377
    %v2577 = vunpack.c.l.b16 %v2378
    %v2578 = vunpack.c.l.b16 %v2379
    %v2579 = vunpack.c.l.b16 %v2380
    %v2580 = vunpack.c.l.b16 %v2381
    %v2581 = vunpack.c.l.b16 %v2382
    %v2582 = vunpack.c.l.b16 %v2383
    %v2583 = vunpack.c.l.b16 %v2384
    %v2584 = vunpack.c.l.b16 %v2385
    %v2585 = vunpack.c.l.b16 %v2386
    %v2586 = vunpack.c.l.b16 %v2387
    %v2587 = vunpack.c.l.b16 %v2388
    %v2588 = vunpack.c.l.b16 %v2389
    %v2589 = vunpack.c.l.b16 %v2390
    %v2590 = vunpack.c.l.b16 %v2391
    %v2591 = vunpack.c.l.b16 %v2392
    %v2592 = vunpack.c.l.b16 %v2393
    %v2593 = vunpack.c.l.b16 %v2394
    %v2594 = vunpack.c.l.b16 %v2395
    %v2595 = vunpack.c.l.b16 %v2396
    %v2596 = vunpack.c.l.b16 %v2397
    %v2597 = vunpack.c.l.b16 %v2398
    %v2598 = vunpack.c.l.b16 %v2399
    %v2599 = vunpack.c.l.b16 %v2400
    %v2600 = vunpack.c.l.b16 %v2401
    %v2601 = vunpack.c.l.b16 %v2402
    %v2602 = vpack.c.b16 %v2507, %v2506
    %v2603 = vpack.c.b16 %v2509, %v2508
    %v2604 = vpack.c.b16 %v2511, %v2510
    %v2605 = vpack.c.b16 %v2513, %v2512
    %v2606 = vpack.c.b16 %v2515, %v2514
    %v2607 = vpack.c.b16 %v2517, %v2516
    %v2608 = vpack.c.b16 %v2519, %v2518
    %v2609 = vpack.c.b16 %v2521, %v2520
    %v2610 = vpack.c.b16 %v2523, %v2522
    %v2611 = vpack.c.b16 %v2525, %v2524
    %v2612 = vpack.c.b16 %v2527, %v2526
    %v2613 = vpack.c.b16 %v2529, %v2528
    %v2614 = vpack.c.b16 %v2531, %v2530
    %v2615 = vpack.c.b16 %v2533, %v2532
    %v2616 = vpack.c.b16 %v2535, %v2534
    %v2617 = vpack.c.b16 %v2537, %v2536
    %v2618 = vpack.c.b16 %v2539, %v2538
    %v2619 = vpack.c.b16 %v2541, %v2540
    %v2620 = vpack.c.b16 %v2543, %v2542
    %v2621 = vpack.c.b16 %v2545, %v2544
    %v2622 = vpack.c.b16 %v2547, %v2546
    %v2623 = vpack.c.b16 %v2549, %v2548
    %v2624 = vpack.c.b16 %v2551, %v2550
    %v2625 = vpack.c.b16 %v2553, %v2552
    %v2626 = vpack.c.b16 %v2555, %v2554
    %v2627 = vpack.c.b16 %v2557, %v2556
    %v2628 = vpack.c.b16 %v2559, %v2558
    %v2629 = vpack.c.b16 %v2561, %v2560
    %v2630 = vpack.c.b16 %v2563, %v2562
    %v2631 = vpack.c.b16 %v2565, %v2564
    %v2632 = vpack.c.b16 %v2567, %v2566
    %v2633 = vpack.c.b16 %v2569, %v2568
    %v2634 = vpack.c.b16 %v2571, %v2570
    %v2635 = vpack.c.b16 %v2573, %v2572
    %v2636 = vpack.c.b16 %v2575, %v2574
    %v2637 = vpack.c.b16 %v2577, %v2576
    %v2638 = vpack.c.b16 %v2579, %v2578
    %v2639 = vpack.c.b16 %v2581, %v2580
    %v2640 = vpack.c.b16 %v2583, %v2582
    %v2641 = vpack.c.b16 %v2585, %v2584
    %v2642 = vpack.c.b16 %v2587, %v2586
    %v2643 = vpack.c.b16 %v2589, %v2588
    %v2644 = vpack.c.b16 %v2591, %v2590
    %v2645 = vpack.c.b16 %v2593, %v2592
    %v2646 = vpack.c.b16 %v2595, %v2594
    %v2647 = vpack.c.b16 %v2597, %v2596
    %v2648 = vpack.c.b16 %v2599, %v2598
    %v2649 = vpack.c.b16 %v2601, %v2600
    %2698 = vmatprep.subr.bf16.mxu0 0
    %2699 = vmatpush1.bf16.msra.mxu0 %v2609
    %2700 = vmatprep.subr.bf16.mxu0 0
    %2701 = vmatpush1.bf16.msra.mxu0 %v2608
    %2702 = vmatprep.subr.bf16.mxu0 0
    %2703 = vmatpush1.bf16.msra.mxu0 %v2607
    %2704 = vmatprep.subr.bf16.mxu0 0
    %2705 = vmatpush1.bf16.msra.mxu0 %v2606
    %2706 = vmatprep.subr.bf16.mxu0 0
    %2707 = vmatpush1.bf16.msra.mxu0 %v2605
    %2708 = vmatprep.subr.bf16.mxu0 0
    %2709 = vmatpush1.bf16.msra.mxu0 %v2604
    %2710 = vmatprep.subr.bf16.mxu0 0
    %2711 = vmatpush1.bf16.msra.mxu0 %v2603
    %2712 = vmatprep.subr.bf16.mxu0 0
    %2713 = vmatpush1.bf16.msra.mxu0 %v2602
    %2714 = vmatprep.subr.bf16.mxu0 0
    %2715 = vmatpush2.bf16.msra.mxu0 %v2617
    %2716 = vmatprep.subr.bf16.mxu0 0
    %2717 = vmatpush2.bf16.msra.mxu0 %v2616
    %2718 = vmatprep.subr.bf16.mxu0 0
    %2719 = vmatpush2.bf16.msra.mxu0 %v2615
    %2720 = vmatprep.subr.bf16.mxu0 0
    %2721 = vmatpush2.bf16.msra.mxu0 %v2614
    %2722 = vmatprep.subr.bf16.mxu0 0
    %2723 = vmatpush2.bf16.msra.mxu0 %v2613
    %2724 = vmatprep.subr.bf16.mxu0 0
    %2725 = vmatpush2.bf16.msra.mxu0 %v2612
    %2726 = vmatprep.subr.bf16.mxu0 0
    %2727 = vmatpush2.bf16.msra.mxu0 %v2611
    %2728 = vmatprep.subr.bf16.mxu0 0
    %2729 = vmatpush2.bf16.msra.mxu0 %v2610
    %2730 = vmatprep.mubr.bf16.mxu0 %v2260
    %2731 = vmatmul.mubr.bf16.gmra.mxu0 %v2259
    %v2732 = vpop.f32.mrf.mxu0
    %v2733 = vadd.f32 %v2408, %v2732
    %v2734 = vpop.f32.mrf.mxu0
    %v2735 = vpop.f32.mrf.mxu0
    %v2736 = vadd.f32 %v2408, %v2735
    %v2737 = vpop.f32.mrf.mxu0
    %2738 = vmatprep.mubr.bf16.mxu0 %v2266
    %2739 = vmatmul.mubr.bf16.gmra.mxu0 %v2265
    %v2740 = vpop.f32.mrf.mxu0
    %v2741 = vadd.f32 %v2408, %v2740
    %v2742 = vpop.f32.mrf.mxu0
    %v2743 = vpop.f32.mrf.mxu0
    %v2744 = vadd.f32 %v2408, %v2743
    %v2745 = vpop.f32.mrf.mxu0
    %2746 = vmatprep.mubr.bf16.mxu0 %v2272
    %2747 = vmatmul.mubr.bf16.gmra.mxu0 %v2271
    %v2748 = vpop.f32.mrf.mxu0
    %v2749 = vadd.f32 %v2408, %v2748
    %v2750 = vpop.f32.mrf.mxu0
    %v2751 = vpop.f32.mrf.mxu0
    %v2752 = vadd.f32 %v2408, %v2751
    %v2753 = vpop.f32.mrf.mxu0
    %2754 = vmatprep.mubr.bf16.mxu0 %v2278
    %2755 = vmatmul.mubr.bf16.gmra.mxu0 %v2277
    %v2756 = vpop.f32.mrf.mxu0
    %v2757 = vadd.f32 %v2408, %v2756
    %v2758 = vpop.f32.mrf.mxu0
    %v2759 = vpop.f32.mrf.mxu0
    %v2760 = vadd.f32 %v2408, %v2759
    %v2761 = vpop.f32.mrf.mxu0
    %2762 = vmatprep.mubr.bf16.mxu0 %v2284
    %2763 = vmatmul.mubr.bf16.gmra.mxu0 %v2283
    %v2764 = vpop.f32.mrf.mxu0
    %v2765 = vadd.f32 %v2408, %v2764
    %v2766 = vpop.f32.mrf.mxu0
    %v2767 = vpop.f32.mrf.mxu0
    %v2768 = vadd.f32 %v2408, %v2767
    %v2769 = vpop.f32.mrf.mxu0
    %2770 = vmatprep.mubr.bf16.mxu0 %v2290
    %2771 = vmatmul.mubr.bf16.gmra.mxu0 %v2289
    %v2772 = vpop.f32.mrf.mxu0
    %v2773 = vadd.f32 %v2408, %v2772
    %v2774 = vpop.f32.mrf.mxu0
    %v2775 = vpop.f32.mrf.mxu0
    %v2776 = vadd.f32 %v2408, %v2775
    %v2777 = vpop.f32.mrf.mxu0
    %2778 = vmatprep.mubr.bf16.mxu0 %v2296
    %2779 = vmatmul.mubr.bf16.gmra.mxu0 %v2295
    %v2780 = vpop.f32.mrf.mxu0
    %v2781 = vadd.f32 %v2408, %v2780
    %v2782 = vpop.f32.mrf.mxu0
    %v2783 = vpop.f32.mrf.mxu0
    %v2784 = vadd.f32 %v2408, %v2783
    %v2785 = vpop.f32.mrf.mxu0
    %2786 = vmatprep.mubr.bf16.mxu0 %v2302
    %2787 = vmatmul.mubr.bf16.gmra.mxu0 %v2301
    %v2788 = vpop.f32.mrf.mxu0
    %v2789 = vadd.f32 %v2408, %v2788
    %v2790 = vpop.f32.mrf.mxu0
    %v2791 = vpop.f32.mrf.mxu0
    %v2792 = vadd.f32 %v2408, %v2791
    %v2793 = vpop.f32.mrf.mxu0
    %2794 = vdwg.mxu0
    %2795 = vmatprep.subr.bf16.mxu0 0
    %2796 = vmatpush1.bf16.msra.mxu0 %v2625
    %2797 = vmatprep.subr.bf16.mxu0 0
    %2798 = vmatpush1.bf16.msra.mxu0 %v2624
    %2799 = vmatprep.subr.bf16.mxu0 0
    %2800 = vmatpush1.bf16.msra.mxu0 %v2623
    %2801 = vmatprep.subr.bf16.mxu0 0
    %2802 = vmatpush1.bf16.msra.mxu0 %v2622
    %2803 = vmatprep.subr.bf16.mxu0 0
    %2804 = vmatpush1.bf16.msra.mxu0 %v2621
    %2805 = vmatprep.subr.bf16.mxu0 0
    %2806 = vmatpush1.bf16.msra.mxu0 %v2620
    %2807 = vmatprep.subr.bf16.mxu0 0
    %2808 = vmatpush1.bf16.msra.mxu0 %v2619
    %2809 = vmatprep.subr.bf16.mxu0 0
    %2810 = vmatpush1.bf16.msra.mxu0 %v2618
    %2811 = vmatprep.subr.bf16.mxu0 0
    %2812 = vmatpush2.bf16.msra.mxu0 %v2633
    %2813 = vmatprep.subr.bf16.mxu0 0
    %2814 = vmatpush2.bf16.msra.mxu0 %v2632
    %2815 = vmatprep.subr.bf16.mxu0 0
    %2816 = vmatpush2.bf16.msra.mxu0 %v2631
    %2817 = vmatprep.subr.bf16.mxu0 0
    %2818 = vmatpush2.bf16.msra.mxu0 %v2630
    %2819 = vmatprep.subr.bf16.mxu0 0
    %2820 = vmatpush2.bf16.msra.mxu0 %v2629
    %2821 = vmatprep.subr.bf16.mxu0 0
    %2822 = vmatpush2.bf16.msra.mxu0 %v2628
    %2823 = vmatprep.subr.bf16.mxu0 0
    %2824 = vmatpush2.bf16.msra.mxu0 %v2627
    %2825 = vmatprep.subr.bf16.mxu0 0
    %2826 = vmatpush2.bf16.msra.mxu0 %v2626
    %2827 = vmatprep.mubr.bf16.mxu0 %v2262
    %2828 = vmatmul.mubr.bf16.gmra.mxu0 %v2261
    %v2829 = vpop.f32.mrf.mxu0
    %v2830 = vadd.f32 %v2733, %v2829
    %v2831 = vpop.f32.mrf.mxu0
    %v2832 = vpop.f32.mrf.mxu0
    %v2833 = vadd.f32 %v2736, %v2832
    %v2834 = vpop.f32.mrf.mxu0
    %2835 = vmatprep.mubr.bf16.mxu0 %v2268
    %2836 = vmatmul.mubr.bf16.gmra.mxu0 %v2267
    %v2837 = vpop.f32.mrf.mxu0
    %v2838 = vadd.f32 %v2741, %v2837
    %v2839 = vpop.f32.mrf.mxu0
    %v2840 = vpop.f32.mrf.mxu0
    %v2841 = vadd.f32 %v2744, %v2840
    %v2842 = vpop.f32.mrf.mxu0
    %2843 = vmatprep.mubr.bf16.mxu0 %v2274
    %2844 = vmatmul.mubr.bf16.gmra.mxu0 %v2273
    %v2845 = vpop.f32.mrf.mxu0
    %v2846 = vadd.f32 %v2749, %v2845
    %v2847 = vpop.f32.mrf.mxu0
    %v2848 = vpop.f32.mrf.mxu0
    %v2849 = vadd.f32 %v2752, %v2848
    %v2850 = vpop.f32.mrf.mxu0
    %2851 = vmatprep.mubr.bf16.mxu0 %v2280
    %2852 = vmatmul.mubr.bf16.gmra.mxu0 %v2279
    %v2853 = vpop.f32.mrf.mxu0
    %v2854 = vadd.f32 %v2757, %v2853
    %v2855 = vpop.f32.mrf.mxu0
    %v2856 = vpop.f32.mrf.mxu0
    %v2857 = vadd.f32 %v2760, %v2856
    %v2858 = vpop.f32.mrf.mxu0
    %2859 = vmatprep.mubr.bf16.mxu0 %v2286
    %2860 = vmatmul.mubr.bf16.gmra.mxu0 %v2285
    %v2861 = vpop.f32.mrf.mxu0
    %v2862 = vadd.f32 %v2765, %v2861
    %v2863 = vpop.f32.mrf.mxu0
    %v2864 = vpop.f32.mrf.mxu0
    %v2865 = vadd.f32 %v2768, %v2864
    %v2866 = vpop.f32.mrf.mxu0
    %2867 = vmatprep.mubr.bf16.mxu0 %v2292
    %2868 = vmatmul.mubr.bf16.gmra.mxu0 %v2291
    %v2869 = vpop.f32.mrf.mxu0
    %v2870 = vadd.f32 %v2773, %v2869
    %v2871 = vpop.f32.mrf.mxu0
    %v2872 = vpop.f32.mrf.mxu0
    %v2873 = vadd.f32 %v2776, %v2872
    %v2874 = vpop.f32.mrf.mxu0
    %2875 = vmatprep.mubr.bf16.mxu0 %v2298
    %2876 = vmatmul.mubr.bf16.gmra.mxu0 %v2297
    %v2877 = vpop.f32.mrf.mxu0
    %v2878 = vadd.f32 %v2781, %v2877
    %v2879 = vpop.f32.mrf.mxu0
    %v2880 = vpop.f32.mrf.mxu0
    %v2881 = vadd.f32 %v2784, %v2880
    %v2882 = vpop.f32.mrf.mxu0
    %2883 = vmatprep.mubr.bf16.mxu0 %v2304
    %2884 = vmatmul.mubr.bf16.gmra.mxu0 %v2303
    %v2885 = vpop.f32.mrf.mxu0
    %v2886 = vadd.f32 %v2789, %v2885
    %v2887 = vpop.f32.mrf.mxu0
    %v2888 = vpop.f32.mrf.mxu0
    %v2889 = vadd.f32 %v2792, %v2888
    %v2890 = vpop.f32.mrf.mxu0
    %2891 = vdwg.mxu0
    %2892 = vmatprep.subr.bf16.mxu0 0
    %2893 = vmatpush1.bf16.msra.mxu0 %v2641
    %2894 = vmatprep.subr.bf16.mxu0 0
    %2895 = vmatpush1.bf16.msra.mxu0 %v2640
    %2896 = vmatprep.subr.bf16.mxu0 0
    %2897 = vmatpush1.bf16.msra.mxu0 %v2639
    %2898 = vmatprep.subr.bf16.mxu0 0
    %2899 = vmatpush1.bf16.msra.mxu0 %v2638
    %2900 = vmatprep.subr.bf16.mxu0 0
    %2901 = vmatpush1.bf16.msra.mxu0 %v2637
    %2902 = vmatprep.subr.bf16.mxu0 0
    %2903 = vmatpush1.bf16.msra.mxu0 %v2636
    %2904 = vmatprep.subr.bf16.mxu0 0
    %2905 = vmatpush1.bf16.msra.mxu0 %v2635
    %2906 = vmatprep.subr.bf16.mxu0 0
    %2907 = vmatpush1.bf16.msra.mxu0 %v2634
    %2908 = vmatprep.subr.bf16.mxu0 0
    %2909 = vmatpush2.bf16.msra.mxu0 %v2649
    %2910 = vmatprep.subr.bf16.mxu0 0
    %2911 = vmatpush2.bf16.msra.mxu0 %v2648
    %2912 = vmatprep.subr.bf16.mxu0 0
    %2913 = vmatpush2.bf16.msra.mxu0 %v2647
    %2914 = vmatprep.subr.bf16.mxu0 0
    %2915 = vmatpush2.bf16.msra.mxu0 %v2646
    %2916 = vmatprep.subr.bf16.mxu0 0
    %2917 = vmatpush2.bf16.msra.mxu0 %v2645
    %2918 = vmatprep.subr.bf16.mxu0 0
    %2919 = vmatpush2.bf16.msra.mxu0 %v2644
    %2920 = vmatprep.subr.bf16.mxu0 0
    %2921 = vmatpush2.bf16.msra.mxu0 %v2643
    %2922 = vmatprep.subr.bf16.mxu0 0
    %2923 = vmatpush2.bf16.msra.mxu0 %v2642
    %2924 = vmatprep.mubr.bf16.mxu0 %v2264
    %2925 = vmatmul.mubr.bf16.gmra.mxu0 %v2263
    %v2926 = vpop.f32.mrf.mxu0
    %v2927 = vadd.f32 %v2830, %v2926
    %v2928 = vpop.f32.mrf.mxu0
    %v2929 = vpop.f32.mrf.mxu0
    %v2930 = vadd.f32 %v2833, %v2929
    %v2931 = vpop.f32.mrf.mxu0
    %2932 = vmatprep.mubr.bf16.mxu0 %v2270
    %2933 = vmatmul.mubr.bf16.gmra.mxu0 %v2269
    %v2934 = vpop.f32.mrf.mxu0
    %v2935 = vadd.f32 %v2838, %v2934
    %v2936 = vpop.f32.mrf.mxu0
    %v2937 = vpop.f32.mrf.mxu0
    %v2938 = vadd.f32 %v2841, %v2937
    %v2939 = vpop.f32.mrf.mxu0
    %2940 = vmatprep.mubr.bf16.mxu0 %v2276
    %2941 = vmatmul.mubr.bf16.gmra.mxu0 %v2275
    %v2942 = vpop.f32.mrf.mxu0
    %v2943 = vadd.f32 %v2846, %v2942
    %v2944 = vpop.f32.mrf.mxu0
    %v2945 = vpop.f32.mrf.mxu0
    %v2946 = vadd.f32 %v2849, %v2945
    %v2947 = vpop.f32.mrf.mxu0
    %2948 = vmatprep.mubr.bf16.mxu0 %v2282
    %2949 = vmatmul.mubr.bf16.gmra.mxu0 %v2281
    %v2950 = vpop.f32.mrf.mxu0
    %v2951 = vadd.f32 %v2854, %v2950
    %v2952 = vpop.f32.mrf.mxu0
    %v2953 = vpop.f32.mrf.mxu0
    %v2954 = vadd.f32 %v2857, %v2953
    %v2955 = vpop.f32.mrf.mxu0
    %2956 = vmatprep.mubr.bf16.mxu0 %v2288
    %2957 = vmatmul.mubr.bf16.gmra.mxu0 %v2287
    %v2958 = vpop.f32.mrf.mxu0
    %v2959 = vadd.f32 %v2862, %v2958
    %v2960 = vpop.f32.mrf.mxu0
    %v2961 = vpop.f32.mrf.mxu0
    %v2962 = vadd.f32 %v2865, %v2961
    %v2963 = vpop.f32.mrf.mxu0
    %2964 = vmatprep.mubr.bf16.mxu0 %v2294
    %2965 = vmatmul.mubr.bf16.gmra.mxu0 %v2293
    %v2966 = vpop.f32.mrf.mxu0
    %v2967 = vadd.f32 %v2870, %v2966
    %v2968 = vpop.f32.mrf.mxu0
    %v2969 = vpop.f32.mrf.mxu0
    %v2970 = vadd.f32 %v2873, %v2969
    %v2971 = vpop.f32.mrf.mxu0
    %2972 = vmatprep.mubr.bf16.mxu0 %v2300
    %2973 = vmatmul.mubr.bf16.gmra.mxu0 %v2299
    %v2974 = vpop.f32.mrf.mxu0
    %v2975 = vadd.f32 %v2878, %v2974
    %v2976 = vpop.f32.mrf.mxu0
    %v2977 = vpop.f32.mrf.mxu0
    %v2978 = vadd.f32 %v2881, %v2977
    %v2979 = vpop.f32.mrf.mxu0
    %2980 = vmatprep.mubr.bf16.mxu0 %v2306
    %2981 = vmatmul.mubr.bf16.gmra.mxu0 %v2305
    %v2982 = vpop.f32.mrf.mxu0
    %v2983 = vadd.f32 %v2886, %v2982
    %v2984 = vpop.f32.mrf.mxu0
    %v2985 = vpop.f32.mrf.mxu0
    %v2986 = vadd.f32 %v2889, %v2985
    %v2987 = vpop.f32.mrf.mxu0
    %2988 = vdwg.mxu0
    %2989 = vst [vmem:[#allocation7] sm:$0xff] %v2927
    %2990 = vst [vmem:[#allocation7 + $0x8] sm:$0xff] %v2930
    %2991 = vst [vmem:[#allocation7 + $0x10] sm:$0xff] %v2935
    %2992 = vst [vmem:[#allocation7 + $0x18] sm:$0xff] %v2938
    %2993 = vst [vmem:[#allocation7 + $0x20] sm:$0xff] %v2943
    %2994 = vst [vmem:[#allocation7 + $0x28] sm:$0xff] %v2946
    %2995 = vst [vmem:[#allocation7 + $0x30] sm:$0xff] %v2951
    %2996 = vst [vmem:[#allocation7 + $0x38] sm:$0xff] %v2954
    %2997 = vst [vmem:[#allocation7 + $0x40] sm:$0xff] %v2959
    %2998 = vst [vmem:[#allocation7 + $0x48] sm:$0xff] %v2962
    %2999 = vst [vmem:[#allocation7 + $0x50] sm:$0xff] %v2967
    %3000 = vst [vmem:[#allocation7 + $0x58] sm:$0xff] %v2970
    %3001 = vst [vmem:[#allocation7 + $0x60] sm:$0xff] %v2975
    %3002 = vst [vmem:[#allocation7 + $0x68] sm:$0xff] %v2978
    %3003 = vst [vmem:[#allocation7 + $0x70] sm:$0xff] %v2983
    %3004 = vst [vmem:[#allocation7 + $0x78] sm:$0xff] %v2986
    // Predicated region
    $region34: #{tpu_custom_call.1} parent=1 // pred_check
      _
    $region35: #{tpu_custom_call.1} parent=1 // pred_check_branch
      %3006 = sbr.rel (0) target = $region37
    $region36: #{tpu_custom_call.1} parent=1 // pred_region
      %s3008 = ssub.s32 2048, 2048
      %3009 = vsyncadd [#allocation4], %s3008
      %s3010 = sshll.u32 [#allocation7], 4
      %s3011 = int_to_ptr.vmem [resolvable:$true] %s3010
      %3016 = dma.vmem_to_hbm [thread:$0]  %s3011, 2048, %s6, [#allocation4], 128, 128, 8
    $region37: #{tpu_custom_call.1} parent=1 // pred_fallthru
      _
    // Predicated region
    $region38: #{tpu_custom_call.1} parent=1 // pred_check
      _
    $region39: #{tpu_custom_call.1} parent=1 // pred_check_branch
      %3018 = sbr.rel (0) target = $region41
    $region40: #{tpu_custom_call.1} parent=1 // pred_region
      %3019 = dma.done [#allocation4], 2048
    $region41: #{tpu_custom_call.1} parent=1 // pred_fallthru
      _
    %3020 = vsyncpa [#allocation3], 1
    %3021 = vsyncpa [#allocation6], 1
    %3022 = vsyncpa [#allocation4], 1

</llo_original>
